<compile_context>
chip_gen: v7x
topology: tpu7x:2x2x1
jax: 0.10.0
libtpu: 0.0.40
codegen_flags: <defaults>
</compile_context>

<pallas_src>
import math

import jax
import jax.numpy as jnp
from jax.experimental import pallas as pl
from jax.experimental.pallas import tpu as pltpu

# ----------------------------- synthetic config -----------------------------
BATCH = 2
SEQ = 16
HIDDEN = 128            # embedding_dim (lane-dense stand-in for 768)
NUM_HEADS = 4
HEAD_DIM = HIDDEN // NUM_HEADS    # 32
FFN = 256               # lane-dense stand-in for 3072
NUM_LAYERS = 2
VOCAB = 64
PROMPT_LENS = 4         # prompt_len * prompt_num
PROMPT_TOKEN_ID = 5     # config.prompt_token_ids
MASK_TOKEN_ID = 7       # config.mask_token_ids
LN_EPS = 1e-12
BS = BATCH * SEQ        # batch folded into the matmul M dimension


# ------------------------------ Pallas kernel --------------------------------
def _ln(x, g, b):
    mu = jnp.mean(x, axis=-1, keepdims=True)
    var = jnp.mean((x - mu) ** 2, axis=-1, keepdims=True)
    return (x - mu) * jax.lax.rsqrt(var + LN_EPS) * g + b


def encoder_kernel(x_ref, bias_ref,
                   wqkv_ref, bqkv_ref, wo_ref, bo_ref, g1_ref, be1_ref,
                   w1_ref, b1_ref, w2_ref, b2_ref, g2_ref, be2_ref,
                   out_ref):
    """Grid axis 0 = encoder layer.

    Activations (BS, H) f32 live in out_ref across all grid steps (same block
    index every step -> VMEM-resident); per-layer bf16 weights are streamed by
    their BlockSpecs (default double-buffering). x / bias use a constant index
    map so they are DMA'd only once.
    """
    layer = pl.program_id(0)

    @pl.when(layer == 0)
    def _init():
        out_ref[...] = x_ref[...]

    x = out_ref[...]                      # (BS, H) f32, resident across layers
    bias = bias_ref[...]                  # (BS, BS) f32 additive attention bias

    # ---- fused QKV projection: one lane-dense (H, 3H) bf16 matmul ----
    qkv = jnp.dot(x.astype(jnp.bfloat16), wqkv_ref[0],
                  preferred_element_type=jnp.float32) + bqkv_ref[0]   # (BS, 3H)

    scale = 1.0 / math.sqrt(HEAD_DIM)
    q_all = (qkv[:, :HIDDEN] * scale).astype(jnp.bfloat16)             # (BS, H)
    k_all_t = qkv[:, HIDDEN:2 * HIDDEN].T.astype(jnp.bfloat16)         # (H, BS), one XLU transpose
    v_all = qkv[:, 2 * HIDDEN:].astype(jnp.bfloat16)                   # (BS, H)
    wo = wo_ref[0]                                                      # (H, H) bf16

    attn = jnp.zeros((BS, HIDDEN), jnp.float32)
    for h in range(NUM_HEADS):            # static unrolled head loop
        lo = h * HEAD_DIM
        q_h = q_all[:, lo:lo + HEAD_DIM]                               # (BS, HD)
        kt_h = k_all_t[lo:lo + HEAD_DIM, :]                            # (HD, BS)
        v_h = v_all[:, lo:lo + HEAD_DIM]                               # (BS, HD)

        s = jnp.dot(q_h, kt_h, preferred_element_type=jnp.float32) + bias
        s = s - jnp.max(s, axis=-1, keepdims=True)
        p = jnp.exp(s)
        p = p * pl.reciprocal(jnp.sum(p, axis=-1, keepdims=True), approx=True)

        ctx = jnp.dot(p.astype(jnp.bfloat16), v_h,
                      preferred_element_type=jnp.float32)              # (BS, HD)
        # Avoid the per-head concatenate: concat_h(ctx_h) @ Wo
        #   == sum_h ctx_h @ Wo[h*HD:(h+1)*HD, :]
        attn = attn + jnp.dot(ctx.astype(jnp.bfloat16),
                              wo[lo:lo + HEAD_DIM, :],
                              preferred_element_type=jnp.float32)
    attn = attn + bo_ref[0]

    h1 = _ln(x + attn, g1_ref[0], be1_ref[0])

    ff = jnp.dot(h1.astype(jnp.bfloat16), w1_ref[0],
                 preferred_element_type=jnp.float32) + b1_ref[0]
    # TODO(synk): HF BERT default is the exact erf GELU; tanh approximation used here.
    ff = jax.nn.gelu(ff, approximate=True)
    ff = jnp.dot(ff.astype(jnp.bfloat16), w2_ref[0],
                 preferred_element_type=jnp.float32) + b2_ref[0]

    out_ref[...] = _ln(h1 + ff, g2_ref[0], be2_ref[0])


def bert_encoder_pallas(x2d, attn_bias, enc):
    """x2d: (B*S, H) f32.  attn_bias: (B*S, B*S) f32 additive bias.
    enc: dict of per-layer params stacked along a leading (L, ...) axis."""
    L = enc["wqkv"].shape[0]
    names = ["wqkv", "bqkv", "wo", "bo", "ln1_g", "ln1_b",
             "w1", "b1", "w2", "b2", "ln2_g", "ln2_b"]
    plist = [enc[n] for n in names]

    in_specs = [
        pl.BlockSpec((BS, HIDDEN), lambda l: (0, 0)),   # activations: DMA'd once
        pl.BlockSpec((BS, BS), lambda l: (0, 0)),       # attention bias: once
    ] + [
        # Per-layer weight streaming (block over the layer axis); at real BERT
        # sizes this is the layout that fits v7x's 64 MiB VMEM as well.
        pl.BlockSpec((1,) + p.shape[1:], lambda l: (l, 0, 0)) for p in plist
    ]

    flops_layer = (2 * BS * HIDDEN * 3 * HIDDEN                 # QKV
                   + NUM_HEADS * 2 * (2 * BS * BS * HEAD_DIM)   # scores + ctx
                   + NUM_HEADS * 2 * BS * HEAD_DIM * HIDDEN     # Wo accumulation
                   + 2 * (2 * BS * HIDDEN * FFN))               # FFN
    trans_layer = NUM_HEADS * BS * BS + BS * FFN + 6 * BS
    bytes_w = sum(int(p.size) * p.dtype.itemsize for p in plist)
    cost = pl.CostEstimate(
        flops=int(flops_layer * L),
        transcendentals=int(trans_layer * L),
        bytes_accessed=int(bytes_w + 2 * BS * HIDDEN * 4 + BS * BS * 4),
    )

    return pl.pallas_call(
        encoder_kernel,
        out_shape=jax.ShapeDtypeStruct((BS, HIDDEN), jnp.float32),
        grid_spec=pltpu.PrefetchScalarGridSpec(
            num_scalar_prefetch=0,
            grid=(L,),
            in_specs=in_specs,
            out_specs=pl.BlockSpec((BS, HIDDEN), lambda l: (0, 0)),
        ),
        # Layer axis carries the resident activation block -> must be serial.
        compiler_params=pltpu.CompilerParams(
            dimension_semantics=("arbitrary",)),
        cost_estimate=cost,
    )(x2d, attn_bias, *plist)


# ------------------------------ parameter init --------------------------------
def init_params(key):
    ks = jax.random.split(key, 4 + NUM_LAYERS)
    std = 0.02
    params = {
        "word_emb": std * jax.random.normal(ks[0], (VOCAB, HIDDEN), jnp.float32),
        "pos_emb":  std * jax.random.normal(ks[1], (SEQ, HIDDEN), jnp.float32),
        "emb_ln_g": jnp.ones((HIDDEN,), jnp.float32),
        "emb_ln_b": jnp.zeros((HIDDEN,), jnp.float32),
    }
    # _init_prompt (prompt_init == 1): every soft-prompt row = one word-embedding row.
    params["soft_prompt"] = jnp.tile(params["word_emb"][3][None, :], (PROMPT_LENS, 1))

    wqkv, bqkv, wo, bo = [], [], [], []
    ln1g, ln1b, w1, b1, w2, b2, ln2g, ln2b = [], [], [], [], [], [], [], []
    for li in range(NUM_LAYERS):
        lk = jax.random.split(ks[4 + li], 6)
        wq = std * jax.random.normal(lk[0], (HIDDEN, HIDDEN), jnp.float32)
        wk = std * jax.random.normal(lk[1], (HIDDEN, HIDDEN), jnp.float32)
        wv = std * jax.random.normal(lk[2], (HIDDEN, HIDDEN), jnp.float32)
        wqkv.append(jnp.concatenate([wq, wk, wv], axis=1).astype(jnp.bfloat16))
        bqkv.append(jnp.zeros((1, 3 * HIDDEN), jnp.float32))
        wo.append((std * jax.random.normal(lk[3], (HIDDEN, HIDDEN),
                                           jnp.float32)).astype(jnp.bfloat16))
        bo.append(jnp.zeros((1, HIDDEN), jnp.float32))
        ln1g.append(jnp.ones((1, HIDDEN), jnp.float32))
        ln1b.append(jnp.zeros((1, HIDDEN), jnp.float32))
        w1.append((std * jax.random.normal(lk[4], (HIDDEN, FFN),
                                           jnp.float32)).astype(jnp.bfloat16))
        b1.append(jnp.zeros((1, FFN), jnp.float32))
        w2.append((std * jax.random.normal(lk[5], (FFN, HIDDEN),
                                           jnp.float32)).astype(jnp.bfloat16))
        b2.append(jnp.zeros((1, HIDDEN), jnp.float32))
        ln2g.append(jnp.ones((1, HIDDEN), jnp.float32))
        ln2b.append(jnp.zeros((1, HIDDEN), jnp.float32))

    params["encoder"] = {
        "wqkv": jnp.stack(wqkv), "bqkv": jnp.stack(bqkv),
        "wo": jnp.stack(wo), "bo": jnp.stack(bo),
        "ln1_g": jnp.stack(ln1g), "ln1_b": jnp.stack(ln1b),
        "w1": jnp.stack(w1), "b1": jnp.stack(b1),
        "w2": jnp.stack(w2), "b2": jnp.stack(b2),
        "ln2_g": jnp.stack(ln2g), "ln2_b": jnp.stack(ln2b),
    }
    return params


# ------------------------------ full forward ----------------------------------
@jax.jit
def encoding_model_forward(ids, attention_mask, params):
    """EncodingModel.forward(inputs, is_des=False, is_slow=False),
       pattern='hybridprompt'.  ids: (B,S) int32, attention_mask: (B,S) int32."""
    B, S = ids.shape

    # --- embedding_input(): word emb with ordered soft-prompt substitution ---
    word_emb = jnp.take(params["word_emb"], ids, axis=0)              # (B,S,H)
    is_prompt = (ids == PROMPT_TOKEN_ID)
    p_idx = jnp.clip(jnp.cumsum(is_prompt.astype(jnp.int32), axis=1) - 1,
                     0, PROMPT_LENS - 1)
    prompt_emb = jnp.take(params["soft_prompt"], p_idx, axis=0)       # (B,S,H)
    emb = jnp.where(is_prompt[..., None], prompt_emb, word_emb)

    # --- BERT embeddings (position emb + LayerNorm) ---
    emb = emb + params["pos_emb"][None, :S]
    mu = jnp.mean(emb, axis=-1, keepdims=True)
    var = jnp.mean((emb - mu) ** 2, axis=-1, keepdims=True)
    x = (emb - mu) * jax.lax.rsqrt(var + LN_EPS) * params["emb_ln_g"] + params["emb_ln_b"]

    # --- fold batch into rows; block-diagonal additive bias reproduces the
    #     per-batch masked softmax exactly (exp(-1e9 - max) == 0 in f32) ---
    x2d = x.reshape(B * S, HIDDEN)
    batch_of = jnp.arange(B * S) // S
    same_batch = batch_of[:, None] == batch_of[None, :]
    key_valid = attention_mask.reshape(B * S) > 0
    attn_bias = jnp.where(same_batch & key_valid[None, :], 0.0, -1e9).astype(jnp.float32)

    # --- all encoder layers in ONE Pallas call ---
    y2d = bert_encoder_pallas(x2d, attn_bias, params["encoder"])
    y = y2d.reshape(B, S, HIDDEN)

    # --- pattern 'hybridprompt', is_des=False: take hidden at first [MASK] ---
    mask_pos = jnp.argmax((ids == MASK_TOKEN_ID).astype(jnp.int32), axis=1)  # 0 if absent
    return y[jnp.arange(B), mask_pos]                                        # (B, H)


# ----------------------------------- main --------------------------------------
if __name__ == "__main__":
    key = jax.random.PRNGKey(0)
    pkey, ikey = jax.random.split(key)
    params = init_params(pkey)

    # Deterministic example inputs: random token ids, with prompt tokens and a
    # [MASK] token inserted, and a valid attention mask with some padding.
    ids = jax.random.randint(ikey, (BATCH, SEQ), 8, VOCAB, dtype=jnp.int32)
    ids = ids.at[:, 1:1 + PROMPT_LENS].set(PROMPT_TOKEN_ID)   # prompt slots
    ids = ids.at[:, 6].set(MASK_TOKEN_ID)                     # [MASK] position
    attention_mask = jnp.ones((BATCH, SEQ), dtype=jnp.int32)
    attention_mask = attention_mask.at[:, SEQ - 2:].set(0)    # some padding

    out = encoding_model_forward(ids, attention_mask, params)
    out = jax.block_until_ready(out)

    assert out.shape == (BATCH, HIDDEN), out.shape
    assert bool(jnp.all(jnp.isfinite(out)))
    print("KERNEL_OK")
</pallas_src>

<mosaic_0001>
module attributes {stable_mosaic.version = 11 : i64} {
  func.func @encoder_kernel(%arg0: i32, %arg1: memref<32x128xf32, #tpu.memory_space<vmem>>, %arg2: memref<32x32xf32, #tpu.memory_space<vmem>>, %arg3: memref<1x128x384xbf16, #tpu.memory_space<vmem>>, %arg4: memref<1x1x384xf32, #tpu.memory_space<vmem>>, %arg5: memref<1x128x128xbf16, #tpu.memory_space<vmem>>, %arg6: memref<1x1x128xf32, #tpu.memory_space<vmem>>, %arg7: memref<1x1x128xf32, #tpu.memory_space<vmem>>, %arg8: memref<1x1x128xf32, #tpu.memory_space<vmem>>, %arg9: memref<1x128x256xbf16, #tpu.memory_space<vmem>>, %arg10: memref<1x1x256xf32, #tpu.memory_space<vmem>>, %arg11: memref<1x256x128xbf16, #tpu.memory_space<vmem>>, %arg12: memref<1x1x128xf32, #tpu.memory_space<vmem>>, %arg13: memref<1x1x128xf32, #tpu.memory_space<vmem>>, %arg14: memref<1x1x128xf32, #tpu.memory_space<vmem>>, %arg15: memref<32x128xf32, #tpu.memory_space<vmem>>) attributes {dimension_semantics = [#tpu.dimension_semantics<arbitrary>], iteration_bounds = array<i64: 2>, scalar_prefetch = 0 : i64, scratch_operands = 0 : i64, tpu.core_type = #tpu.core_type<tc>, window_params = [{pipeline_mode = #tpu.pipeline_mode<synchronous>, transform_indices = @transform_0, window_bounds = array<i64: 32, 128>}, {pipeline_mode = #tpu.pipeline_mode<synchronous>, transform_indices = @transform_1, window_bounds = array<i64: 32, 32>}, {transform_indices = @transform_2, window_bounds = array<i64: 1, 128, 384>}, {transform_indices = @transform_3, window_bounds = array<i64: 1, 1, 384>}, {transform_indices = @transform_4, window_bounds = array<i64: 1, 128, 128>}, {transform_indices = @transform_5, window_bounds = array<i64: 1, 1, 128>}, {transform_indices = @transform_6, window_bounds = array<i64: 1, 1, 128>}, {transform_indices = @transform_7, window_bounds = array<i64: 1, 1, 128>}, {transform_indices = @transform_8, window_bounds = array<i64: 1, 128, 256>}, {transform_indices = @transform_9, window_bounds = array<i64: 1, 1, 256>}, {transform_indices = @transform_10, window_bounds = array<i64: 1, 256, 128>}, {transform_indices = @transform_11, window_bounds = array<i64: 1, 1, 128>}, {transform_indices = @transform_12, window_bounds = array<i64: 1, 1, 128>}, {transform_indices = @transform_13, window_bounds = array<i64: 1, 1, 128>}, {pipeline_mode = #tpu.pipeline_mode<synchronous>, transform_indices = @transform_14, window_bounds = array<i64: 32, 128>}]} {
    %c0_i32 = arith.constant 0 : i32
    %0 = arith.cmpi eq, %arg0, %c0_i32 : i32
    %1 = arith.extui %0 : i1 to i32
    %c0_i32_0 = arith.constant 0 : i32
    %2 = arith.cmpi ne, %1, %c0_i32_0 : i32
    scf.if %2 {
      %c0_80 = arith.constant 0 : index
      %c0_81 = arith.constant 0 : index
      %197 = vector.load %arg1[%c0_80, %c0_81] : memref<32x128xf32, #tpu.memory_space<vmem>>, vector<32x128xf32>
      %c0_82 = arith.constant 0 : index
      %c0_83 = arith.constant 0 : index
      %198 = vector.load %arg15[%c0_82, %c0_83] : memref<32x128xf32, #tpu.memory_space<vmem>>, vector<32x128xf32>
      tpu.vector_store %arg15[%c0_82, %c0_83], %197 {strides = array<i32>} : memref<32x128xf32, #tpu.memory_space<vmem>>, vector<32x128xf32>,
    } else {
    }
    %c0 = arith.constant 0 : index
    %c0_1 = arith.constant 0 : index
    %3 = vector.load %arg15[%c0, %c0_1] : memref<32x128xf32, #tpu.memory_space<vmem>>, vector<32x128xf32>
    %c0_2 = arith.constant 0 : index
    %c0_3 = arith.constant 0 : index
    %4 = vector.load %arg2[%c0_2, %c0_3] : memref<32x32xf32, #tpu.memory_space<vmem>>, vector<32x32xf32>
    %5 = arith.truncf %3 : vector<32x128xf32> to vector<32x128xbf16>
    %c0_4 = arith.constant 0 : index
    %c0_5 = arith.constant 0 : index
    %c0_6 = arith.constant 0 : index
    %6 = vector.load %arg3[%c0_4, %c0_5, %c0_6] : memref<1x128x384xbf16, #tpu.memory_space<vmem>>, vector<1x128x384xbf16>
    %7 = vector.shape_cast %6 : vector<1x128x384xbf16> to vector<128x384xbf16>
    %cst = arith.constant dense<0.000000e+00> : vector<32x384xf32>
    %8 = tpu.matmul %5, %7, %cst {dimension_numbers = #tpu.dot_dimension_numbers<[1], [0], [0], [1], [0, 0, 1, 1], [], []>} : vector<32x128xbf16>, vector<128x384xbf16>, vector<32x384xf32> -> vector<32x384xf32>
    %c0_7 = arith.constant 0 : index
    %c0_8 = arith.constant 0 : index
    %c0_9 = arith.constant 0 : index
    %9 = vector.load %arg4[%c0_7, %c0_8, %c0_9] : memref<1x1x384xf32, #tpu.memory_space<vmem>>, vector<1x1x384xf32>
    %10 = vector.shape_cast %9 : vector<1x1x384xf32> to vector<1x384xf32>
    %11 = vector.broadcast %10 : vector<1x384xf32> to vector<32x384xf32>
    %12 = arith.addf %8, %11 : vector<32x384xf32>
    %13 = vector.extract_strided_slice %12 {offsets = [0, 0], sizes = [32, 128], strides = [1, 1]} : vector<32x384xf32> to vector<32x128xf32>
    %cst_10 = arith.constant 0.176776692 : f32
    %14 = vector.broadcast %cst_10 : f32 to vector<32x128xf32>
    %15 = arith.mulf %13, %14 : vector<32x128xf32>
    %16 = arith.truncf %15 : vector<32x128xf32> to vector<32x128xbf16>
    %17 = vector.extract_strided_slice %12 {offsets = [0, 128], sizes = [32, 128], strides = [1, 1]} : vector<32x384xf32> to vector<32x128xf32>
    %18 = tpu.transpose %17, [1, 0] : vector<32x128xf32> -> vector<128x32xf32>
    %19 = arith.truncf %18 : vector<128x32xf32> to vector<128x32xbf16>
    %20 = vector.extract_strided_slice %12 {offsets = [0, 256], sizes = [32, 128], strides = [1, 1]} : vector<32x384xf32> to vector<32x128xf32>
    %21 = arith.truncf %20 : vector<32x128xf32> to vector<32x128xbf16>
    %c0_11 = arith.constant 0 : index
    %c0_12 = arith.constant 0 : index
    %c0_13 = arith.constant 0 : index
    %22 = vector.load %arg5[%c0_11, %c0_12, %c0_13] : memref<1x128x128xbf16, #tpu.memory_space<vmem>>, vector<1x128x128xbf16>
    %23 = vector.shape_cast %22 : vector<1x128x128xbf16> to vector<128x128xbf16>
    %cst_14 = arith.constant 0.000000e+00 : f32
    %24 = vector.broadcast %cst_14 : f32 to vector<32x128xf32>
    %25 = vector.extract_strided_slice %16 {offsets = [0, 0], sizes = [32, 32], strides = [1, 1]} : vector<32x128xbf16> to vector<32x32xbf16>
    %26 = vector.extract_strided_slice %19 {offsets = [0, 0], sizes = [32, 32], strides = [1, 1]} : vector<128x32xbf16> to vector<32x32xbf16>
    %27 = vector.extract_strided_slice %21 {offsets = [0, 0], sizes = [32, 32], strides = [1, 1]} : vector<32x128xbf16> to vector<32x32xbf16>
    %cst_15 = arith.constant dense<0.000000e+00> : vector<32x32xf32>
    %28 = tpu.matmul %25, %26, %cst_15 {dimension_numbers = #tpu.dot_dimension_numbers<[1], [0], [0], [1], [0, 0, 1, 1], [], []>} : vector<32x32xbf16>, vector<32x32xbf16>, vector<32x32xf32> -> vector<32x32xf32>
    %29 = arith.addf %28, %4 : vector<32x32xf32>
    %cst_16 = arith.constant dense<0xFF800000> : vector<32xf32>
    %30 = vector.multi_reduction <maximumf>, %29, %cst_16 [1] : vector<32x32xf32> to vector<32xf32>
    %31 = vector.shape_cast %30 : vector<32xf32> to vector<32x1xf32>
    %32 = vector.broadcast %31 : vector<32x1xf32> to vector<32x32xf32>
    %33 = arith.subf %29, %32 : vector<32x32xf32>
    %34 = math.exp %33 : vector<32x32xf32>
    %cst_17 = arith.constant dense<0.000000e+00> : vector<32xf32>
    %35 = vector.multi_reduction <add>, %34, %cst_17 [1] : vector<32x32xf32> to vector<32xf32>
    %36 = vector.shape_cast %35 : vector<32xf32> to vector<32x1xf32>
    %37 = tpu.reciprocal %36 {approx = true} : vector<32x1xf32> -> vector<32x1xf32>
    %38 = vector.broadcast %37 : vector<32x1xf32> to vector<32x32xf32>
    %39 = arith.mulf %34, %38 : vector<32x32xf32>
    %40 = arith.truncf %39 : vector<32x32xf32> to vector<32x32xbf16>
    %cst_18 = arith.constant dense<0.000000e+00> : vector<32x32xf32>
    %41 = tpu.matmul %40, %27, %cst_18 {dimension_numbers = #tpu.dot_dimension_numbers<[1], [0], [0], [1], [0, 0, 1, 1], [], []>} : vector<32x32xbf16>, vector<32x32xbf16>, vector<32x32xf32> -> vector<32x32xf32>
    %42 = arith.truncf %41 : vector<32x32xf32> to vector<32x32xbf16>
    %43 = vector.extract_strided_slice %23 {offsets = [0, 0], sizes = [32, 128], strides = [1, 1]} : vector<128x128xbf16> to vector<32x128xbf16>
    %cst_19 = arith.constant dense<0.000000e+00> : vector<32x128xf32>
    %44 = tpu.matmul %42, %43, %cst_19 {dimension_numbers = #tpu.dot_dimension_numbers<[1], [0], [0], [1], [0, 0, 1, 1], [], []>} : vector<32x32xbf16>, vector<32x128xbf16>, vector<32x128xf32> -> vector<32x128xf32>
    %45 = arith.addf %24, %44 : vector<32x128xf32>
    %46 = vector.extract_strided_slice %16 {offsets = [0, 32], sizes = [32, 32], strides = [1, 1]} : vector<32x128xbf16> to vector<32x32xbf16>
    %47 = vector.extract_strided_slice %19 {offsets = [32, 0], sizes = [32, 32], strides = [1, 1]} : vector<128x32xbf16> to vector<32x32xbf16>
    %48 = vector.extract_strided_slice %21 {offsets = [0, 32], sizes = [32, 32], strides = [1, 1]} : vector<32x128xbf16> to vector<32x32xbf16>
    %cst_20 = arith.constant dense<0.000000e+00> : vector<32x32xf32>
    %49 = tpu.matmul %46, %47, %cst_20 {dimension_numbers = #tpu.dot_dimension_numbers<[1], [0], [0], [1], [0, 0, 1, 1], [], []>} : vector<32x32xbf16>, vector<32x32xbf16>, vector<32x32xf32> -> vector<32x32xf32>
    %50 = arith.addf %49, %4 : vector<32x32xf32>
    %cst_21 = arith.constant dense<0xFF800000> : vector<32xf32>
    %51 = vector.multi_reduction <maximumf>, %50, %cst_21 [1] : vector<32x32xf32> to vector<32xf32>
    %52 = vector.shape_cast %51 : vector<32xf32> to vector<32x1xf32>
    %53 = vector.broadcast %52 : vector<32x1xf32> to vector<32x32xf32>
    %54 = arith.subf %50, %53 : vector<32x32xf32>
    %55 = math.exp %54 : vector<32x32xf32>
    %cst_22 = arith.constant dense<0.000000e+00> : vector<32xf32>
    %56 = vector.multi_reduction <add>, %55, %cst_22 [1] : vector<32x32xf32> to vector<32xf32>
    %57 = vector.shape_cast %56 : vector<32xf32> to vector<32x1xf32>
    %58 = tpu.reciprocal %57 {approx = true} : vector<32x1xf32> -> vector<32x1xf32>
    %59 = vector.broadcast %58 : vector<32x1xf32> to vector<32x32xf32>
    %60 = arith.mulf %55, %59 : vector<32x32xf32>
    %61 = arith.truncf %60 : vector<32x32xf32> to vector<32x32xbf16>
    %cst_23 = arith.constant dense<0.000000e+00> : vector<32x32xf32>
    %62 = tpu.matmul %61, %48, %cst_23 {dimension_numbers = #tpu.dot_dimension_numbers<[1], [0], [0], [1], [0, 0, 1, 1], [], []>} : vector<32x32xbf16>, vector<32x32xbf16>, vector<32x32xf32> -> vector<32x32xf32>
    %63 = arith.truncf %62 : vector<32x32xf32> to vector<32x32xbf16>
    %64 = vector.extract_strided_slice %23 {offsets = [32, 0], sizes = [32, 128], strides = [1, 1]} : vector<128x128xbf16> to vector<32x128xbf16>
    %cst_24 = arith.constant dense<0.000000e+00> : vector<32x128xf32>
    %65 = tpu.matmul %63, %64, %cst_24 {dimension_numbers = #tpu.dot_dimension_numbers<[1], [0], [0], [1], [0, 0, 1, 1], [], []>} : vector<32x32xbf16>, vector<32x128xbf16>, vector<32x128xf32> -> vector<32x128xf32>
    %66 = arith.addf %45, %65 : vector<32x128xf32>
    %67 = vector.extract_strided_slice %16 {offsets = [0, 64], sizes = [32, 32], strides = [1, 1]} : vector<32x128xbf16> to vector<32x32xbf16>
    %68 = vector.extract_strided_slice %19 {offsets = [64, 0], sizes = [32, 32], strides = [1, 1]} : vector<128x32xbf16> to vector<32x32xbf16>
    %69 = vector.extract_strided_slice %21 {offsets = [0, 64], sizes = [32, 32], strides = [1, 1]} : vector<32x128xbf16> to vector<32x32xbf16>
    %cst_25 = arith.constant dense<0.000000e+00> : vector<32x32xf32>
    %70 = tpu.matmul %67, %68, %cst_25 {dimension_numbers = #tpu.dot_dimension_numbers<[1], [0], [0], [1], [0, 0, 1, 1], [], []>} : vector<32x32xbf16>, vector<32x32xbf16>, vector<32x32xf32> -> vector<32x32xf32>
    %71 = arith.addf %70, %4 : vector<32x32xf32>
    %cst_26 = arith.constant dense<0xFF800000> : vector<32xf32>
    %72 = vector.multi_reduction <maximumf>, %71, %cst_26 [1] : vector<32x32xf32> to vector<32xf32>
    %73 = vector.shape_cast %72 : vector<32xf32> to vector<32x1xf32>
    %74 = vector.broadcast %73 : vector<32x1xf32> to vector<32x32xf32>
    %75 = arith.subf %71, %74 : vector<32x32xf32>
    %76 = math.exp %75 : vector<32x32xf32>
    %cst_27 = arith.constant dense<0.000000e+00> : vector<32xf32>
    %77 = vector.multi_reduction <add>, %76, %cst_27 [1] : vector<32x32xf32> to vector<32xf32>
    %78 = vector.shape_cast %77 : vector<32xf32> to vector<32x1xf32>
    %79 = tpu.reciprocal %78 {approx = true} : vector<32x1xf32> -> vector<32x1xf32>
    %80 = vector.broadcast %79 : vector<32x1xf32> to vector<32x32xf32>
    %81 = arith.mulf %76, %80 : vector<32x32xf32>
    %82 = arith.truncf %81 : vector<32x32xf32> to vector<32x32xbf16>
    %cst_28 = arith.constant dense<0.000000e+00> : vector<32x32xf32>
    %83 = tpu.matmul %82, %69, %cst_28 {dimension_numbers = #tpu.dot_dimension_numbers<[1], [0], [0], [1], [0, 0, 1, 1], [], []>} : vector<32x32xbf16>, vector<32x32xbf16>, vector<32x32xf32> -> vector<32x32xf32>
    %84 = arith.truncf %83 : vector<32x32xf32> to vector<32x32xbf16>
    %85 = vector.extract_strided_slice %23 {offsets = [64, 0], sizes = [32, 128], strides = [1, 1]} : vector<128x128xbf16> to vector<32x128xbf16>
    %cst_29 = arith.constant dense<0.000000e+00> : vector<32x128xf32>
    %86 = tpu.matmul %84, %85, %cst_29 {dimension_numbers = #tpu.dot_dimension_numbers<[1], [0], [0], [1], [0, 0, 1, 1], [], []>} : vector<32x32xbf16>, vector<32x128xbf16>, vector<32x128xf32> -> vector<32x128xf32>
    %87 = arith.addf %66, %86 : vector<32x128xf32>
    %88 = vector.extract_strided_slice %16 {offsets = [0, 96], sizes = [32, 32], strides = [1, 1]} : vector<32x128xbf16> to vector<32x32xbf16>
    %89 = vector.extract_strided_slice %19 {offsets = [96, 0], sizes = [32, 32], strides = [1, 1]} : vector<128x32xbf16> to vector<32x32xbf16>
    %90 = vector.extract_strided_slice %21 {offsets = [0, 96], sizes = [32, 32], strides = [1, 1]} : vector<32x128xbf16> to vector<32x32xbf16>
    %cst_30 = arith.constant dense<0.000000e+00> : vector<32x32xf32>
    %91 = tpu.matmul %88, %89, %cst_30 {dimension_numbers = #tpu.dot_dimension_numbers<[1], [0], [0], [1], [0, 0, 1, 1], [], []>} : vector<32x32xbf16>, vector<32x32xbf16>, vector<32x32xf32> -> vector<32x32xf32>
    %92 = arith.addf %91, %4 : vector<32x32xf32>
    %cst_31 = arith.constant dense<0xFF800000> : vector<32xf32>
    %93 = vector.multi_reduction <maximumf>, %92, %cst_31 [1] : vector<32x32xf32> to vector<32xf32>
    %94 = vector.shape_cast %93 : vector<32xf32> to vector<32x1xf32>
    %95 = vector.broadcast %94 : vector<32x1xf32> to vector<32x32xf32>
    %96 = arith.subf %92, %95 : vector<32x32xf32>
    %97 = math.exp %96 : vector<32x32xf32>
    %cst_32 = arith.constant dense<0.000000e+00> : vector<32xf32>
    %98 = vector.multi_reduction <add>, %97, %cst_32 [1] : vector<32x32xf32> to vector<32xf32>
    %99 = vector.shape_cast %98 : vector<32xf32> to vector<32x1xf32>
    %100 = tpu.reciprocal %99 {approx = true} : vector<32x1xf32> -> vector<32x1xf32>
    %101 = vector.broadcast %100 : vector<32x1xf32> to vector<32x32xf32>
    %102 = arith.mulf %97, %101 : vector<32x32xf32>
    %103 = arith.truncf %102 : vector<32x32xf32> to vector<32x32xbf16>
    %cst_33 = arith.constant dense<0.000000e+00> : vector<32x32xf32>
    %104 = tpu.matmul %103, %90, %cst_33 {dimension_numbers = #tpu.dot_dimension_numbers<[1], [0], [0], [1], [0, 0, 1, 1], [], []>} : vector<32x32xbf16>, vector<32x32xbf16>, vector<32x32xf32> -> vector<32x32xf32>
    %105 = arith.truncf %104 : vector<32x32xf32> to vector<32x32xbf16>
    %106 = vector.extract_strided_slice %23 {offsets = [96, 0], sizes = [32, 128], strides = [1, 1]} : vector<128x128xbf16> to vector<32x128xbf16>
    %cst_34 = arith.constant dense<0.000000e+00> : vector<32x128xf32>
    %107 = tpu.matmul %105, %106, %cst_34 {dimension_numbers = #tpu.dot_dimension_numbers<[1], [0], [0], [1], [0, 0, 1, 1], [], []>} : vector<32x32xbf16>, vector<32x128xbf16>, vector<32x128xf32> -> vector<32x128xf32>
    %108 = arith.addf %87, %107 : vector<32x128xf32>
    %c0_35 = arith.constant 0 : index
    %c0_36 = arith.constant 0 : index
    %c0_37 = arith.constant 0 : index
    %109 = vector.load %arg6[%c0_35, %c0_36, %c0_37] : memref<1x1x128xf32, #tpu.memory_space<vmem>>, vector<1x1x128xf32>
    %110 = vector.shape_cast %109 : vector<1x1x128xf32> to vector<1x128xf32>
    %111 = vector.broadcast %110 : vector<1x128xf32> to vector<32x128xf32>
    %112 = arith.addf %108, %111 : vector<32x128xf32>
    %113 = arith.addf %3, %112 : vector<32x128xf32>
    %c0_38 = arith.constant 0 : index
    %c0_39 = arith.constant 0 : index
    %c0_40 = arith.constant 0 : index
    %114 = vector.load %arg7[%c0_38, %c0_39, %c0_40] : memref<1x1x128xf32, #tpu.memory_space<vmem>>, vector<1x1x128xf32>
    %115 = vector.shape_cast %114 : vector<1x1x128xf32> to vector<1x128xf32>
    %c0_41 = arith.constant 0 : index
    %c0_42 = arith.constant 0 : index
    %c0_43 = arith.constant 0 : index
    %116 = vector.load %arg8[%c0_41, %c0_42, %c0_43] : memref<1x1x128xf32, #tpu.memory_space<vmem>>, vector<1x1x128xf32>
    %117 = vector.shape_cast %116 : vector<1x1x128xf32> to vector<1x128xf32>
    %cst_44 = arith.constant dense<0.000000e+00> : vector<32xf32>
    %118 = vector.multi_reduction <add>, %113, %cst_44 [1] : vector<32x128xf32> to vector<32xf32>
    %119 = vector.shape_cast %118 : vector<32xf32> to vector<32x1xf32>
    %cst_45 = arith.constant 1.280000e+02 : f32
    %120 = vector.broadcast %cst_45 : f32 to vector<32x1xf32>
    %121 = arith.divf %119, %120 : vector<32x1xf32>
    %122 = vector.broadcast %121 : vector<32x1xf32> to vector<32x128xf32>
    %123 = arith.subf %113, %122 : vector<32x128xf32>
    %124 = arith.mulf %123, %123 : vector<32x128xf32>
    %cst_46 = arith.constant dense<0.000000e+00> : vector<32xf32>
    %125 = vector.multi_reduction <add>, %124, %cst_46 [1] : vector<32x128xf32> to vector<32xf32>
    %126 = vector.shape_cast %125 : vector<32xf32> to vector<32x1xf32>
    %cst_47 = arith.constant 1.280000e+02 : f32
    %127 = vector.broadcast %cst_47 : f32 to vector<32x1xf32>
    %128 = arith.divf %126, %127 : vector<32x1xf32>
    %129 = vector.broadcast %121 : vector<32x1xf32> to vector<32x128xf32>
    %130 = arith.subf %113, %129 : vector<32x128xf32>
    %cst_48 = arith.constant 9.99999996E-13 : f32
    %131 = vector.broadcast %cst_48 : f32 to vector<32x1xf32>
    %132 = arith.addf %128, %131 : vector<32x1xf32>
    %133 = math.rsqrt %132 : vector<32x1xf32>
    %134 = vector.broadcast %133 : vector<32x1xf32> to vector<32x128xf32>
    %135 = arith.mulf %130, %134 : vector<32x128xf32>
    %136 = vector.broadcast %115 : vector<1x128xf32> to vector<32x128xf32>
    %137 = arith.mulf %135, %136 : vector<32x128xf32>
    %138 = vector.broadcast %117 : vector<1x128xf32> to vector<32x128xf32>
    %139 = arith.addf %137, %138 : vector<32x128xf32>
    %140 = arith.truncf %139 : vector<32x128xf32> to vector<32x128xbf16>
    %c0_49 = arith.constant 0 : index
    %c0_50 = arith.constant 0 : index
    %c0_51 = arith.constant 0 : index
    %141 = vector.load %arg9[%c0_49, %c0_50, %c0_51] : memref<1x128x256xbf16, #tpu.memory_space<vmem>>, vector<1x128x256xbf16>
    %142 = vector.shape_cast %141 : vector<1x128x256xbf16> to vector<128x256xbf16>
    %cst_52 = arith.constant dense<0.000000e+00> : vector<32x256xf32>
    %143 = tpu.matmul %140, %142, %cst_52 {dimension_numbers = #tpu.dot_dimension_numbers<[1], [0], [0], [1], [0, 0, 1, 1], [], []>} : vector<32x128xbf16>, vector<128x256xbf16>, vector<32x256xf32> -> vector<32x256xf32>
    %c0_53 = arith.constant 0 : index
    %c0_54 = arith.constant 0 : index
    %c0_55 = arith.constant 0 : index
    %144 = vector.load %arg10[%c0_53, %c0_54, %c0_55] : memref<1x1x256xf32, #tpu.memory_space<vmem>>, vector<1x1x256xf32>
    %145 = vector.shape_cast %144 : vector<1x1x256xf32> to vector<1x256xf32>
    %146 = vector.broadcast %145 : vector<1x256xf32> to vector<32x256xf32>
    %147 = arith.addf %143, %146 : vector<32x256xf32>
    %148 = arith.mulf %147, %147 : vector<32x256xf32>
    %149 = arith.mulf %147, %148 : vector<32x256xf32>
    %cst_56 = arith.constant 4.471500e-02 : f32
    %150 = vector.broadcast %cst_56 : f32 to vector<32x256xf32>
    %151 = arith.mulf %150, %149 : vector<32x256xf32>
    %152 = arith.addf %147, %151 : vector<32x256xf32>
    %cst_57 = arith.constant 0.797884583 : f32
    %153 = vector.broadcast %cst_57 : f32 to vector<32x256xf32>
    %154 = arith.mulf %153, %152 : vector<32x256xf32>
    %155 = math.tanh %154 : vector<32x256xf32>
    %cst_58 = arith.constant 1.000000e+00 : f32
    %156 = vector.broadcast %cst_58 : f32 to vector<32x256xf32>
    %157 = arith.addf %156, %155 : vector<32x256xf32>
    %cst_59 = arith.constant 5.000000e-01 : f32
    %158 = vector.broadcast %cst_59 : f32 to vector<32x256xf32>
    %159 = arith.mulf %158, %157 : vector<32x256xf32>
    %160 = arith.mulf %147, %159 : vector<32x256xf32>
    %161 = arith.truncf %160 : vector<32x256xf32> to vector<32x256xbf16>
    %c0_60 = arith.constant 0 : index
    %c0_61 = arith.constant 0 : index
    %c0_62 = arith.constant 0 : index
    %162 = vector.load %arg11[%c0_60, %c0_61, %c0_62] : memref<1x256x128xbf16, #tpu.memory_space<vmem>>, vector<1x256x128xbf16>
    %163 = vector.shape_cast %162 : vector<1x256x128xbf16> to vector<256x128xbf16>
    %cst_63 = arith.constant dense<0.000000e+00> : vector<32x128xf32>
    %164 = tpu.matmul %161, %163, %cst_63 {dimension_numbers = #tpu.dot_dimension_numbers<[1], [0], [0], [1], [0, 0, 1, 1], [], []>} : vector<32x256xbf16>, vector<256x128xbf16>, vector<32x128xf32> -> vector<32x128xf32>
    %c0_64 = arith.constant 0 : index
    %c0_65 = arith.constant 0 : index
    %c0_66 = arith.constant 0 : index
    %165 = vector.load %arg12[%c0_64, %c0_65, %c0_66] : memref<1x1x128xf32, #tpu.memory_space<vmem>>, vector<1x1x128xf32>
    %166 = vector.shape_cast %165 : vector<1x1x128xf32> to vector<1x128xf32>
    %167 = vector.broadcast %166 : vector<1x128xf32> to vector<32x128xf32>
    %168 = arith.addf %164, %167 : vector<32x128xf32>
    %169 = arith.addf %139, %168 : vector<32x128xf32>
    %c0_67 = arith.constant 0 : index
    %c0_68 = arith.constant 0 : index
    %c0_69 = arith.constant 0 : index
    %170 = vector.load %arg13[%c0_67, %c0_68, %c0_69] : memref<1x1x128xf32, #tpu.memory_space<vmem>>, vector<1x1x128xf32>
    %171 = vector.shape_cast %170 : vector<1x1x128xf32> to vector<1x128xf32>
    %c0_70 = arith.constant 0 : index
    %c0_71 = arith.constant 0 : index
    %c0_72 = arith.constant 0 : index
    %172 = vector.load %arg14[%c0_70, %c0_71, %c0_72] : memref<1x1x128xf32, #tpu.memory_space<vmem>>, vector<1x1x128xf32>
    %173 = vector.shape_cast %172 : vector<1x1x128xf32> to vector<1x128xf32>
    %cst_73 = arith.constant dense<0.000000e+00> : vector<32xf32>
    %174 = vector.multi_reduction <add>, %169, %cst_73 [1] : vector<32x128xf32> to vector<32xf32>
    %175 = vector.shape_cast %174 : vector<32xf32> to vector<32x1xf32>
    %cst_74 = arith.constant 1.280000e+02 : f32
    %176 = vector.broadcast %cst_74 : f32 to vector<32x1xf32>
    %177 = arith.divf %175, %176 : vector<32x1xf32>
    %178 = vector.broadcast %177 : vector<32x1xf32> to vector<32x128xf32>
    %179 = arith.subf %169, %178 : vector<32x128xf32>
    %180 = arith.mulf %179, %179 : vector<32x128xf32>
    %cst_75 = arith.constant dense<0.000000e+00> : vector<32xf32>
    %181 = vector.multi_reduction <add>, %180, %cst_75 [1] : vector<32x128xf32> to vector<32xf32>
    %182 = vector.shape_cast %181 : vector<32xf32> to vector<32x1xf32>
    %cst_76 = arith.constant 1.280000e+02 : f32
    %183 = vector.broadcast %cst_76 : f32 to vector<32x1xf32>
    %184 = arith.divf %182, %183 : vector<32x1xf32>
    %185 = vector.broadcast %177 : vector<32x1xf32> to vector<32x128xf32>
    %186 = arith.subf %169, %185 : vector<32x128xf32>
    %cst_77 = arith.constant 9.99999996E-13 : f32
    %187 = vector.broadcast %cst_77 : f32 to vector<32x1xf32>
    %188 = arith.addf %184, %187 : vector<32x1xf32>
    %189 = math.rsqrt %188 : vector<32x1xf32>
    %190 = vector.broadcast %189 : vector<32x1xf32> to vector<32x128xf32>
    %191 = arith.mulf %186, %190 : vector<32x128xf32>
    %192 = vector.broadcast %171 : vector<1x128xf32> to vector<32x128xf32>
    %193 = arith.mulf %191, %192 : vector<32x128xf32>
    %194 = vector.broadcast %173 : vector<1x128xf32> to vector<32x128xf32>
    %195 = arith.addf %193, %194 : vector<32x128xf32>
    %c0_78 = arith.constant 0 : index
    %c0_79 = arith.constant 0 : index
    %196 = vector.load %arg15[%c0_78, %c0_79] : memref<32x128xf32, #tpu.memory_space<vmem>>, vector<32x128xf32>
    tpu.vector_store %arg15[%c0_78, %c0_79], %195 {strides = array<i32>} : memref<32x128xf32, #tpu.memory_space<vmem>>, vector<32x128xf32>,
    return
  }
  func.func @transform_0(%arg0: i32) -> (i32, i32) {
    %c0_i32 = arith.constant 0 : i32
    %c0_i32_0 = arith.constant 0 : i32
    %c0_i32_1 = arith.constant 0 : i32
    return %c0_i32, %c0_i32_0 : i32, i32
  }
  func.func @transform_1(%arg0: i32) -> (i32, i32) {
    %c0_i32 = arith.constant 0 : i32
    %c0_i32_0 = arith.constant 0 : i32
    %c0_i32_1 = arith.constant 0 : i32
    return %c0_i32, %c0_i32_0 : i32, i32
  }
  func.func @transform_2(%arg0: i32) -> (i32, i32, i32) {
    %c0_i32 = arith.constant 0 : i32
    %c0_i32_0 = arith.constant 0 : i32
    %c0_i32_1 = arith.constant 0 : i32
    return %arg0, %c0_i32, %c0_i32_0 : i32, i32, i32
  }
  func.func @transform_3(%arg0: i32) -> (i32, i32, i32) {
    %c0_i32 = arith.constant 0 : i32
    %c0_i32_0 = arith.constant 0 : i32
    %c0_i32_1 = arith.constant 0 : i32
    return %arg0, %c0_i32, %c0_i32_0 : i32, i32, i32
  }
  func.func @transform_4(%arg0: i32) -> (i32, i32, i32) {
    %c0_i32 = arith.constant 0 : i32
    %c0_i32_0 = arith.constant 0 : i32
    %c0_i32_1 = arith.constant 0 : i32
    return %arg0, %c0_i32, %c0_i32_0 : i32, i32, i32
  }
  func.func @transform_5(%arg0: i32) -> (i32, i32, i32) {
    %c0_i32 = arith.constant 0 : i32
    %c0_i32_0 = arith.constant 0 : i32
    %c0_i32_1 = arith.constant 0 : i32
    return %arg0, %c0_i32, %c0_i32_0 : i32, i32, i32
  }
  func.func @transform_6(%arg0: i32) -> (i32, i32, i32) {
    %c0_i32 = arith.constant 0 : i32
    %c0_i32_0 = arith.constant 0 : i32
    %c0_i32_1 = arith.constant 0 : i32
    return %arg0, %c0_i32, %c0_i32_0 : i32, i32, i32
  }
  func.func @transform_7(%arg0: i32) -> (i32, i32, i32) {
    %c0_i32 = arith.constant 0 : i32
    %c0_i32_0 = arith.constant 0 : i32
    %c0_i32_1 = arith.constant 0 : i32
    return %arg0, %c0_i32, %c0_i32_0 : i32, i32, i32
  }
  func.func @transform_8(%arg0: i32) -> (i32, i32, i32) {
    %c0_i32 = arith.constant 0 : i32
    %c0_i32_0 = arith.constant 0 : i32
    %c0_i32_1 = arith.constant 0 : i32
    return %arg0, %c0_i32, %c0_i32_0 : i32, i32, i32
  }
  func.func @transform_9(%arg0: i32) -> (i32, i32, i32) {
    %c0_i32 = arith.constant 0 : i32
    %c0_i32_0 = arith.constant 0 : i32
    %c0_i32_1 = arith.constant 0 : i32
    return %arg0, %c0_i32, %c0_i32_0 : i32, i32, i32
  }
  func.func @transform_10(%arg0: i32) -> (i32, i32, i32) {
    %c0_i32 = arith.constant 0 : i32
    %c0_i32_0 = arith.constant 0 : i32
    %c0_i32_1 = arith.constant 0 : i32
    return %arg0, %c0_i32, %c0_i32_0 : i32, i32, i32
  }
  func.func @transform_11(%arg0: i32) -> (i32, i32, i32) {
    %c0_i32 = arith.constant 0 : i32
    %c0_i32_0 = arith.constant 0 : i32
    %c0_i32_1 = arith.constant 0 : i32
    return %arg0, %c0_i32, %c0_i32_0 : i32, i32, i32
  }
  func.func @transform_12(%arg0: i32) -> (i32, i32, i32) {
    %c0_i32 = arith.constant 0 : i32
    %c0_i32_0 = arith.constant 0 : i32
    %c0_i32_1 = arith.constant 0 : i32
    return %arg0, %c0_i32, %c0_i32_0 : i32, i32, i32
  }
  func.func @transform_13(%arg0: i32) -> (i32, i32, i32) {
    %c0_i32 = arith.constant 0 : i32
    %c0_i32_0 = arith.constant 0 : i32
    %c0_i32_1 = arith.constant 0 : i32
    return %arg0, %c0_i32, %c0_i32_0 : i32, i32, i32
  }
  func.func @transform_14(%arg0: i32) -> (i32, i32) {
    %c0_i32 = arith.constant 0 : i32
    %c0_i32_0 = arith.constant 0 : i32
    %c0_i32_1 = arith.constant 0 : i32
    return %c0_i32, %c0_i32_0 : i32, i32
  }
}

</mosaic_0001>

<llo_original>
// kernel: encoding_model_forward.1
$region0: #{encoding_model_forward.1}
  #allocation0 [shape = 'u32[]', space=smem, size = 0x4, offset = 0x4, fixed_abs, tag = 'smem constant byte address 0x4 - core index']
  #allocation1 [shape = 'u32[144,128]{1,0:T(1,128)}', space=vmem, size = 0x12000, scoped, tag = 'internal scratch']
  %s0 = inlined_call_operand.vmem [shape: f32[32,128], index: 0, kind: input, shape index: {}]
  %s1 = inlined_call_operand.vmem [shape: f32[32,32], index: 1, kind: input, shape index: {}]
  %s2 = inlined_call_operand.vmem [shape: bf16[2,128,384], index: 2, kind: input, shape index: {}]
  %s3 = inlined_call_operand.vmem [shape: f32[2,1,384], index: 3, kind: input, shape index: {}]
  %s4 = inlined_call_operand.vmem [shape: bf16[2,128,128], index: 4, kind: input, shape index: {}]
  %s5 = inlined_call_operand.vmem [shape: f32[2,1,128], index: 5, kind: input, shape index: {}]
  %s6 = inlined_call_operand.vmem [shape: f32[2,1,128], index: 6, kind: input, shape index: {}]
  %s7 = inlined_call_operand.vmem [shape: f32[2,1,128], index: 7, kind: input, shape index: {}]
  %s8 = inlined_call_operand.vmem [shape: bf16[2,128,256], index: 8, kind: input, shape index: {}]
  %s9 = inlined_call_operand.vmem [shape: f32[2,1,256], index: 9, kind: input, shape index: {}]
  %s10 = inlined_call_operand.vmem [shape: bf16[2,256,128], index: 10, kind: input, shape index: {}]
  %s11 = inlined_call_operand.vmem [shape: f32[2,1,128], index: 11, kind: input, shape index: {}]
  %s12 = inlined_call_operand.vmem [shape: f32[2,1,128], index: 12, kind: input, shape index: {}]
  %s13 = inlined_call_operand.vmem [shape: f32[2,1,128], index: 13, kind: input, shape index: {}]
  %s14 = inlined_call_operand.vmem [shape: f32[32,128], index: 14, kind: output, shape index: {}]
  %s15 = sld [smem:[#allocation0]]
  $region93: #{encoding_model_forward.1} parent=0
    _
  %s17 = ssub.s32 1, %s15
  %s18 = scalar_select 0, %s17, %s15
  loop: start=0, step=1, limit=4
  $region2: #{encoding_model_forward.1} parent=0 // loop_pre_header
    _
  $region3: #{encoding_model_forward.1} parent=0 // loop_header
    %s20 = sphi 0, %s24
    %p21 = scmp.ge.s32.totalorder %s20, 4
    %s28 = sphi 0, %s28
    %s30 = sphi 0, %s28
    %s31 = sphi 0, %s30
    %s45 = sphi 0, %s31
    %s49 = sphi 0, %s49
    %s51 = sphi 0, %s49
    %s52 = sphi 0, %s51
    %s66 = sphi 0, %s52
    %s72 = sphi 0, %s74
    %s75 = sphi 0, %s72
    %s76 = sphi 0, %s75
    %s92 = sphi 0, %s76
    %s98 = sphi 0, %s100
    %s101 = sphi 0, %s98
    %s102 = sphi 0, %s101
    %s118 = sphi 0, %s102
    %s124 = sphi 0, %s126
    %s127 = sphi 0, %s124
    %s128 = sphi 0, %s127
    %s144 = sphi 0, %s128
    %s150 = sphi 0, %s152
    %s153 = sphi 0, %s150
    %s154 = sphi 0, %s153
    %s170 = sphi 0, %s154
    %s176 = sphi 0, %s178
    %s179 = sphi 0, %s176
    %s180 = sphi 0, %s179
    %s196 = sphi 0, %s180
    %s202 = sphi 0, %s204
    %s205 = sphi 0, %s202
    %s206 = sphi 0, %s205
    %s222 = sphi 0, %s206
    %s228 = sphi 0, %s230
    %s231 = sphi 0, %s228
    %s232 = sphi 0, %s231
    %s248 = sphi 0, %s232
    %s254 = sphi 0, %s256
    %s257 = sphi 0, %s254
    %s258 = sphi 0, %s257
    %s274 = sphi 0, %s258
    %s280 = sphi 0, %s282
    %s283 = sphi 0, %s280
    %s284 = sphi 0, %s283
    %s300 = sphi 0, %s284
    %s306 = sphi 0, %s308
    %s309 = sphi 0, %s306
    %s310 = sphi 0, %s309
    %s326 = sphi 0, %s310
    %s332 = sphi 0, %s334
    %s335 = sphi 0, %s332
    %s336 = sphi 0, %s335
    %s352 = sphi 0, %s336
    %s358 = sphi 0, %s360
    %s361 = sphi 0, %s358
    %s362 = sphi 0, %s361
    %s378 = sphi 0, %s362
    %s382 = sphi 0, %s382
    %s384 = sphi 0, %s382
    %s385 = sphi 0, %s384
    %s399 = sphi 0, %s385
  $region4: #{encoding_model_forward.1} parent=0 // loop_header_branch
    %23 = sbr.rel (%p21) target = $region8
  $region5: #{encoding_model_forward.1} parent=0 // loop_body
    %s25 = ssub.s32 %s20, 1
    %s26 = ssub.s32 %s20, 2
    %s27 = sadd.s32 %s20, 1
    %s29 = sadd.s32 %s28, 1
    %p32 = scmp.eq.s32.totalorder %s20, 1
    %p33 = scmp.ne.s32.totalorder %s28, %s30
    %p34 = scmp.eq.s32.totalorder %s20, 0
    %p35 = por %p33, %p34
    %p36 = scmp.ne.s32.totalorder %s28, %s30
    %p37 = scmp.eq.s32.totalorder %s25, 1
    %p38 = por %p36, %p37
    %p39 = scmp.ne.s32.totalorder %s30, %s31
    %p40 = scmp.eq.s32.totalorder %s25, 0
    %p41 = por %p39, %p40
    %p42 = scmp.ne.s32.totalorder %s30, %s31
    %p43 = scmp.eq.s32.totalorder %s26, 1
    %p44 = por %p42, %p43
    %p46 = scmp.ne.s32.totalorder %s31, %s45
    %p47 = scmp.eq.s32.totalorder %s26, 0
    %p48 = por %p46, %p47
    %s50 = sadd.s32 %s49, 1
    %p53 = scmp.eq.s32.totalorder %s20, 1
    %p54 = scmp.ne.s32.totalorder %s49, %s51
    %p55 = scmp.eq.s32.totalorder %s20, 0
    %p56 = por %p54, %p55
    %p57 = scmp.ne.s32.totalorder %s49, %s51
    %p58 = scmp.eq.s32.totalorder %s25, 1
    %p59 = por %p57, %p58
    %p60 = scmp.ne.s32.totalorder %s51, %s52
    %p61 = scmp.eq.s32.totalorder %s25, 0
    %p62 = por %p60, %p61
    %p63 = scmp.ne.s32.totalorder %s51, %s52
    %p64 = scmp.eq.s32.totalorder %s26, 1
    %p65 = por %p63, %p64
    %p67 = scmp.ne.s32.totalorder %s52, %s66
    %p68 = scmp.eq.s32.totalorder %s26, 0
    %p69 = por %p67, %p68
    %s70 = ssub.s32 %s20, %s27
    %p71 = scmp.eq.s32.totalorder %s70, 0
    %s73 = sadd.s32 %s72, 1
    %s74 = scalar_select %p71, %s72, %s73
    %p77 = pneg %p71
    %p78 = scmp.eq.s32.totalorder %s20, 1
    %p79 = por %p77, %p78
    %p80 = scmp.ne.s32.totalorder %s72, %s75
    %p81 = scmp.eq.s32.totalorder %s20, 0
    %p82 = por %p80, %p81
    %p83 = scmp.ne.s32.totalorder %s72, %s75
    %p84 = scmp.eq.s32.totalorder %s25, 1
    %p85 = por %p83, %p84
    %p86 = scmp.ne.s32.totalorder %s75, %s76
    %p87 = scmp.eq.s32.totalorder %s25, 0
    %p88 = por %p86, %p87
    %p89 = scmp.ne.s32.totalorder %s75, %s76
    %p90 = scmp.eq.s32.totalorder %s26, 1
    %p91 = por %p89, %p90
    %p93 = scmp.ne.s32.totalorder %s76, %s92
    %p94 = scmp.eq.s32.totalorder %s26, 0
    %p95 = por %p93, %p94
    %s96 = ssub.s32 %s20, %s27
    %p97 = scmp.eq.s32.totalorder %s96, 0
    %s99 = sadd.s32 %s98, 1
    %s100 = scalar_select %p97, %s98, %s99
    %p103 = pneg %p97
    %p104 = scmp.eq.s32.totalorder %s20, 1
    %p105 = por %p103, %p104
    %p106 = scmp.ne.s32.totalorder %s98, %s101
    %p107 = scmp.eq.s32.totalorder %s20, 0
    %p108 = por %p106, %p107
    %p109 = scmp.ne.s32.totalorder %s98, %s101
    %p110 = scmp.eq.s32.totalorder %s25, 1
    %p111 = por %p109, %p110
    %p112 = scmp.ne.s32.totalorder %s101, %s102
    %p113 = scmp.eq.s32.totalorder %s25, 0
    %p114 = por %p112, %p113
    %p115 = scmp.ne.s32.totalorder %s101, %s102
    %p116 = scmp.eq.s32.totalorder %s26, 1
    %p117 = por %p115, %p116
    %p119 = scmp.ne.s32.totalorder %s102, %s118
    %p120 = scmp.eq.s32.totalorder %s26, 0
    %p121 = por %p119, %p120
    %s122 = ssub.s32 %s20, %s27
    %p123 = scmp.eq.s32.totalorder %s122, 0
    %s125 = sadd.s32 %s124, 1
    %s126 = scalar_select %p123, %s124, %s125
    %p129 = pneg %p123
    %p130 = scmp.eq.s32.totalorder %s20, 1
    %p131 = por %p129, %p130
    %p132 = scmp.ne.s32.totalorder %s124, %s127
    %p133 = scmp.eq.s32.totalorder %s20, 0
    %p134 = por %p132, %p133
    %p135 = scmp.ne.s32.totalorder %s124, %s127
    %p136 = scmp.eq.s32.totalorder %s25, 1
    %p137 = por %p135, %p136
    %p138 = scmp.ne.s32.totalorder %s127, %s128
    %p139 = scmp.eq.s32.totalorder %s25, 0
    %p140 = por %p138, %p139
    %p141 = scmp.ne.s32.totalorder %s127, %s128
    %p142 = scmp.eq.s32.totalorder %s26, 1
    %p143 = por %p141, %p142
    %p145 = scmp.ne.s32.totalorder %s128, %s144
    %p146 = scmp.eq.s32.totalorder %s26, 0
    %p147 = por %p145, %p146
    %s148 = ssub.s32 %s20, %s27
    %p149 = scmp.eq.s32.totalorder %s148, 0
    %s151 = sadd.s32 %s150, 1
    %s152 = scalar_select %p149, %s150, %s151
    %p155 = pneg %p149
    %p156 = scmp.eq.s32.totalorder %s20, 1
    %p157 = por %p155, %p156
    %p158 = scmp.ne.s32.totalorder %s150, %s153
    %p159 = scmp.eq.s32.totalorder %s20, 0
    %p160 = por %p158, %p159
    %p161 = scmp.ne.s32.totalorder %s150, %s153
    %p162 = scmp.eq.s32.totalorder %s25, 1
    %p163 = por %p161, %p162
    %p164 = scmp.ne.s32.totalorder %s153, %s154
    %p165 = scmp.eq.s32.totalorder %s25, 0
    %p166 = por %p164, %p165
    %p167 = scmp.ne.s32.totalorder %s153, %s154
    %p168 = scmp.eq.s32.totalorder %s26, 1
    %p169 = por %p167, %p168
    %p171 = scmp.ne.s32.totalorder %s154, %s170
    %p172 = scmp.eq.s32.totalorder %s26, 0
    %p173 = por %p171, %p172
    %s174 = ssub.s32 %s20, %s27
    %p175 = scmp.eq.s32.totalorder %s174, 0
    %s177 = sadd.s32 %s176, 1
    %s178 = scalar_select %p175, %s176, %s177
    %p181 = pneg %p175
    %p182 = scmp.eq.s32.totalorder %s20, 1
    %p183 = por %p181, %p182
    %p184 = scmp.ne.s32.totalorder %s176, %s179
    %p185 = scmp.eq.s32.totalorder %s20, 0
    %p186 = por %p184, %p185
    %p187 = scmp.ne.s32.totalorder %s176, %s179
    %p188 = scmp.eq.s32.totalorder %s25, 1
    %p189 = por %p187, %p188
    %p190 = scmp.ne.s32.totalorder %s179, %s180
    %p191 = scmp.eq.s32.totalorder %s25, 0
    %p192 = por %p190, %p191
    %p193 = scmp.ne.s32.totalorder %s179, %s180
    %p194 = scmp.eq.s32.totalorder %s26, 1
    %p195 = por %p193, %p194
    %p197 = scmp.ne.s32.totalorder %s180, %s196
    %p198 = scmp.eq.s32.totalorder %s26, 0
    %p199 = por %p197, %p198
    %s200 = ssub.s32 %s20, %s27
    %p201 = scmp.eq.s32.totalorder %s200, 0
    %s203 = sadd.s32 %s202, 1
    %s204 = scalar_select %p201, %s202, %s203
    %p207 = pneg %p201
    %p208 = scmp.eq.s32.totalorder %s20, 1
    %p209 = por %p207, %p208
    %p210 = scmp.ne.s32.totalorder %s202, %s205
    %p211 = scmp.eq.s32.totalorder %s20, 0
    %p212 = por %p210, %p211
    %p213 = scmp.ne.s32.totalorder %s202, %s205
    %p214 = scmp.eq.s32.totalorder %s25, 1
    %p215 = por %p213, %p214
    %p216 = scmp.ne.s32.totalorder %s205, %s206
    %p217 = scmp.eq.s32.totalorder %s25, 0
    %p218 = por %p216, %p217
    %p219 = scmp.ne.s32.totalorder %s205, %s206
    %p220 = scmp.eq.s32.totalorder %s26, 1
    %p221 = por %p219, %p220
    %p223 = scmp.ne.s32.totalorder %s206, %s222
    %p224 = scmp.eq.s32.totalorder %s26, 0
    %p225 = por %p223, %p224
    %s226 = ssub.s32 %s20, %s27
    %p227 = scmp.eq.s32.totalorder %s226, 0
    %s229 = sadd.s32 %s228, 1
    %s230 = scalar_select %p227, %s228, %s229
    %p233 = pneg %p227
    %p234 = scmp.eq.s32.totalorder %s20, 1
    %p235 = por %p233, %p234
    %p236 = scmp.ne.s32.totalorder %s228, %s231
    %p237 = scmp.eq.s32.totalorder %s20, 0
    %p238 = por %p236, %p237
    %p239 = scmp.ne.s32.totalorder %s228, %s231
    %p240 = scmp.eq.s32.totalorder %s25, 1
    %p241 = por %p239, %p240
    %p242 = scmp.ne.s32.totalorder %s231, %s232
    %p243 = scmp.eq.s32.totalorder %s25, 0
    %p244 = por %p242, %p243
    %p245 = scmp.ne.s32.totalorder %s231, %s232
    %p246 = scmp.eq.s32.totalorder %s26, 1
    %p247 = por %p245, %p246
    %p249 = scmp.ne.s32.totalorder %s232, %s248
    %p250 = scmp.eq.s32.totalorder %s26, 0
    %p251 = por %p249, %p250
    %s252 = ssub.s32 %s20, %s27
    %p253 = scmp.eq.s32.totalorder %s252, 0
    %s255 = sadd.s32 %s254, 1
    %s256 = scalar_select %p253, %s254, %s255
    %p259 = pneg %p253
    %p260 = scmp.eq.s32.totalorder %s20, 1
    %p261 = por %p259, %p260
    %p262 = scmp.ne.s32.totalorder %s254, %s257
    %p263 = scmp.eq.s32.totalorder %s20, 0
    %p264 = por %p262, %p263
    %p265 = scmp.ne.s32.totalorder %s254, %s257
    %p266 = scmp.eq.s32.totalorder %s25, 1
    %p267 = por %p265, %p266
    %p268 = scmp.ne.s32.totalorder %s257, %s258
    %p269 = scmp.eq.s32.totalorder %s25, 0
    %p270 = por %p268, %p269
    %p271 = scmp.ne.s32.totalorder %s257, %s258
    %p272 = scmp.eq.s32.totalorder %s26, 1
    %p273 = por %p271, %p272
    %p275 = scmp.ne.s32.totalorder %s258, %s274
    %p276 = scmp.eq.s32.totalorder %s26, 0
    %p277 = por %p275, %p276
    %s278 = ssub.s32 %s20, %s27
    %p279 = scmp.eq.s32.totalorder %s278, 0
    %s281 = sadd.s32 %s280, 1
    %s282 = scalar_select %p279, %s280, %s281
    %p285 = pneg %p279
    %p286 = scmp.eq.s32.totalorder %s20, 1
    %p287 = por %p285, %p286
    %p288 = scmp.ne.s32.totalorder %s280, %s283
    %p289 = scmp.eq.s32.totalorder %s20, 0
    %p290 = por %p288, %p289
    %p291 = scmp.ne.s32.totalorder %s280, %s283
    %p292 = scmp.eq.s32.totalorder %s25, 1
    %p293 = por %p291, %p292
    %p294 = scmp.ne.s32.totalorder %s283, %s284
    %p295 = scmp.eq.s32.totalorder %s25, 0
    %p296 = por %p294, %p295
    %p297 = scmp.ne.s32.totalorder %s283, %s284
    %p298 = scmp.eq.s32.totalorder %s26, 1
    %p299 = por %p297, %p298
    %p301 = scmp.ne.s32.totalorder %s284, %s300
    %p302 = scmp.eq.s32.totalorder %s26, 0
    %p303 = por %p301, %p302
    %s304 = ssub.s32 %s20, %s27
    %p305 = scmp.eq.s32.totalorder %s304, 0
    %s307 = sadd.s32 %s306, 1
    %s308 = scalar_select %p305, %s306, %s307
    %p311 = pneg %p305
    %p312 = scmp.eq.s32.totalorder %s20, 1
    %p313 = por %p311, %p312
    %p314 = scmp.ne.s32.totalorder %s306, %s309
    %p315 = scmp.eq.s32.totalorder %s20, 0
    %p316 = por %p314, %p315
    %p317 = scmp.ne.s32.totalorder %s306, %s309
    %p318 = scmp.eq.s32.totalorder %s25, 1
    %p319 = por %p317, %p318
    %p320 = scmp.ne.s32.totalorder %s309, %s310
    %p321 = scmp.eq.s32.totalorder %s25, 0
    %p322 = por %p320, %p321
    %p323 = scmp.ne.s32.totalorder %s309, %s310
    %p324 = scmp.eq.s32.totalorder %s26, 1
    %p325 = por %p323, %p324
    %p327 = scmp.ne.s32.totalorder %s310, %s326
    %p328 = scmp.eq.s32.totalorder %s26, 0
    %p329 = por %p327, %p328
    %s330 = ssub.s32 %s20, %s27
    %p331 = scmp.eq.s32.totalorder %s330, 0
    %s333 = sadd.s32 %s332, 1
    %s334 = scalar_select %p331, %s332, %s333
    %p337 = pneg %p331
    %p338 = scmp.eq.s32.totalorder %s20, 1
    %p339 = por %p337, %p338
    %p340 = scmp.ne.s32.totalorder %s332, %s335
    %p341 = scmp.eq.s32.totalorder %s20, 0
    %p342 = por %p340, %p341
    %p343 = scmp.ne.s32.totalorder %s332, %s335
    %p344 = scmp.eq.s32.totalorder %s25, 1
    %p345 = por %p343, %p344
    %p346 = scmp.ne.s32.totalorder %s335, %s336
    %p347 = scmp.eq.s32.totalorder %s25, 0
    %p348 = por %p346, %p347
    %p349 = scmp.ne.s32.totalorder %s335, %s336
    %p350 = scmp.eq.s32.totalorder %s26, 1
    %p351 = por %p349, %p350
    %p353 = scmp.ne.s32.totalorder %s336, %s352
    %p354 = scmp.eq.s32.totalorder %s26, 0
    %p355 = por %p353, %p354
    %s356 = ssub.s32 %s20, %s27
    %p357 = scmp.eq.s32.totalorder %s356, 0
    %s359 = sadd.s32 %s358, 1
    %s360 = scalar_select %p357, %s358, %s359
    %p363 = pneg %p357
    %p364 = scmp.eq.s32.totalorder %s20, 1
    %p365 = por %p363, %p364
    %p366 = scmp.ne.s32.totalorder %s358, %s361
    %p367 = scmp.eq.s32.totalorder %s20, 0
    %p368 = por %p366, %p367
    %p369 = scmp.ne.s32.totalorder %s358, %s361
    %p370 = scmp.eq.s32.totalorder %s25, 1
    %p371 = por %p369, %p370
    %p372 = scmp.ne.s32.totalorder %s361, %s362
    %p373 = scmp.eq.s32.totalorder %s25, 0
    %p374 = por %p372, %p373
    %p375 = scmp.ne.s32.totalorder %s361, %s362
    %p376 = scmp.eq.s32.totalorder %s26, 1
    %p377 = por %p375, %p376
    %p379 = scmp.ne.s32.totalorder %s362, %s378
    %p380 = scmp.eq.s32.totalorder %s26, 0
    %p381 = por %p379, %p380
    %s383 = sadd.s32 %s382, 1
    %p386 = scmp.eq.s32.totalorder %s20, 1
    %p387 = scmp.ne.s32.totalorder %s382, %s384
    %p388 = scmp.eq.s32.totalorder %s20, 0
    %p389 = por %p387, %p388
    %p390 = scmp.ne.s32.totalorder %s382, %s384
    %p391 = scmp.eq.s32.totalorder %s25, 1
    %p392 = por %p390, %p391
    %p393 = scmp.ne.s32.totalorder %s384, %s385
    %p394 = scmp.eq.s32.totalorder %s25, 0
    %p395 = por %p393, %p394
    %p396 = scmp.ne.s32.totalorder %s384, %s385
    %p397 = scmp.eq.s32.totalorder %s26, 1
    %p398 = por %p396, %p397
    %p400 = scmp.ne.s32.totalorder %s385, %s399
    %p401 = scmp.eq.s32.totalorder %s26, 0
    %p402 = por %p400, %p401
    %p403 = scmp.le.s32.totalorder 1, %s20
    %p404 = scmp.lt.s32.totalorder %s20, 3
    %p405 = pnand %p403, %p404
    %p406 = pneg %p405
    // Predicated region
    $region9: #{encoding_model_forward.1} parent=5 // pred_check
      _
    $region10: #{encoding_model_forward.1} parent=5 // pred_check_branch
      %408 = sbr.rel (%p405) target = $region12
    $region11: #{encoding_model_forward.1} parent=5 // pred_region
      %s409 = ssub.s32 %s20, 1
      // Predicated region
      $region13: #{encoding_model_forward.1} parent=11 // pred_check
        %p410 = pneg %p41
      $region14: #{encoding_model_forward.1} parent=11 // pred_check_branch
        %412 = sbr.rel (%p410) target = $region16
      $region15: #{encoding_model_forward.1} parent=11 // pred_region
        _
      $region16: #{encoding_model_forward.1} parent=11 // pred_fallthru
        _
      // Predicated region
      $region17: #{encoding_model_forward.1} parent=11 // pred_check
        %p413 = pneg %p62
      $region18: #{encoding_model_forward.1} parent=11 // pred_check_branch
        %415 = sbr.rel (%p413) target = $region20
      $region19: #{encoding_model_forward.1} parent=11 // pred_region
        _
      $region20: #{encoding_model_forward.1} parent=11 // pred_fallthru
        _
    $region12: #{encoding_model_forward.1} parent=5 // pred_fallthru
      _
    %p416 = scmp.lt.s32.totalorder %s20, 2
    // Predicated region
    $region21: #{encoding_model_forward.1} parent=5 // pred_check
      %p417 = pneg %p416
    $region22: #{encoding_model_forward.1} parent=5 // pred_check_branch
      %419 = sbr.rel (%p417) target = $region24
    $region23: #{encoding_model_forward.1} parent=5 // pred_region
      // Predicated region
      $region25: #{encoding_model_forward.1} parent=23 // pred_check
        %p420 = pneg %p82
      $region26: #{encoding_model_forward.1} parent=23 // pred_check_branch
        %422 = sbr.rel (%p420) target = $region28
      $region27: #{encoding_model_forward.1} parent=23 // pred_region
        %p423 = scmp.lt.s32.totalorder %s20, 1
        %s424 = scalar_select %p423, %s20, 1
        %s425 = smul.addr %s424, 48
        %s426 = smul.addr %s425, 4
        %s427 = scalar_lea.vmem %s2, %s426
      $region28: #{encoding_model_forward.1} parent=23 // pred_fallthru
        _
      // Predicated region
      $region29: #{encoding_model_forward.1} parent=23 // pred_check
        %p428 = pneg %p108
      $region30: #{encoding_model_forward.1} parent=23 // pred_check_branch
        %430 = sbr.rel (%p428) target = $region32
      $region31: #{encoding_model_forward.1} parent=23 // pred_region
        %p431 = scmp.lt.s32.totalorder %s20, 1
        %s432 = scalar_select %p431, %s20, 1
        %s433 = smul.addr %s432, 3
        %s434 = scalar_lea.vmem %s3, %s433
      $region32: #{encoding_model_forward.1} parent=23 // pred_fallthru
        _
      // Predicated region
      $region33: #{encoding_model_forward.1} parent=23 // pred_check
        %p435 = pneg %p134
      $region34: #{encoding_model_forward.1} parent=23 // pred_check_branch
        %437 = sbr.rel (%p435) target = $region36
      $region35: #{encoding_model_forward.1} parent=23 // pred_region
        %p438 = scmp.lt.s32.totalorder %s20, 1
        %s439 = scalar_select %p438, %s20, 1
        %s440 = smul.addr %s439, 16
        %s441 = smul.addr %s440, 4
        %s442 = scalar_lea.vmem %s4, %s441
      $region36: #{encoding_model_forward.1} parent=23 // pred_fallthru
        _
      // Predicated region
      $region37: #{encoding_model_forward.1} parent=23 // pred_check
        %p443 = pneg %p160
      $region38: #{encoding_model_forward.1} parent=23 // pred_check_branch
        %445 = sbr.rel (%p443) target = $region40
      $region39: #{encoding_model_forward.1} parent=23 // pred_region
        %p446 = scmp.lt.s32.totalorder %s20, 1
        %s447 = scalar_select %p446, %s20, 1
        %s448 = scalar_lea.vmem %s5, %s447
      $region40: #{encoding_model_forward.1} parent=23 // pred_fallthru
        _
      // Predicated region
      $region41: #{encoding_model_forward.1} parent=23 // pred_check
        %p449 = pneg %p186
      $region42: #{encoding_model_forward.1} parent=23 // pred_check_branch
        %451 = sbr.rel (%p449) target = $region44
      $region43: #{encoding_model_forward.1} parent=23 // pred_region
        %p452 = scmp.lt.s32.totalorder %s20, 1
        %s453 = scalar_select %p452, %s20, 1
        %s454 = scalar_lea.vmem %s6, %s453
      $region44: #{encoding_model_forward.1} parent=23 // pred_fallthru
        _
      // Predicated region
      $region45: #{encoding_model_forward.1} parent=23 // pred_check
        %p455 = pneg %p212
      $region46: #{encoding_model_forward.1} parent=23 // pred_check_branch
        %457 = sbr.rel (%p455) target = $region48
      $region47: #{encoding_model_forward.1} parent=23 // pred_region
        %p458 = scmp.lt.s32.totalorder %s20, 1
        %s459 = scalar_select %p458, %s20, 1
        %s460 = scalar_lea.vmem %s7, %s459
      $region48: #{encoding_model_forward.1} parent=23 // pred_fallthru
        _
      // Predicated region
      $region49: #{encoding_model_forward.1} parent=23 // pred_check
        %p461 = pneg %p238
      $region50: #{encoding_model_forward.1} parent=23 // pred_check_branch
        %463 = sbr.rel (%p461) target = $region52
      $region51: #{encoding_model_forward.1} parent=23 // pred_region
        %p464 = scmp.lt.s32.totalorder %s20, 1
        %s465 = scalar_select %p464, %s20, 1
        %s466 = smul.addr %s465, 32
        %s467 = smul.addr %s466, 4
        %s468 = scalar_lea.vmem %s8, %s467
      $region52: #{encoding_model_forward.1} parent=23 // pred_fallthru
        _
      // Predicated region
      $region53: #{encoding_model_forward.1} parent=23 // pred_check
        %p469 = pneg %p264
      $region54: #{encoding_model_forward.1} parent=23 // pred_check_branch
        %471 = sbr.rel (%p469) target = $region56
      $region55: #{encoding_model_forward.1} parent=23 // pred_region
        %p472 = scmp.lt.s32.totalorder %s20, 1
        %s473 = scalar_select %p472, %s20, 1
        %s474 = smul.addr %s473, 2
        %s475 = scalar_lea.vmem %s9, %s474
      $region56: #{encoding_model_forward.1} parent=23 // pred_fallthru
        _
      // Predicated region
      $region57: #{encoding_model_forward.1} parent=23 // pred_check
        %p476 = pneg %p290
      $region58: #{encoding_model_forward.1} parent=23 // pred_check_branch
        %478 = sbr.rel (%p476) target = $region60
      $region59: #{encoding_model_forward.1} parent=23 // pred_region
        %p479 = scmp.lt.s32.totalorder %s20, 1
        %s480 = scalar_select %p479, %s20, 1
        %s481 = smul.addr %s480, 32
        %s482 = smul.addr %s481, 4
        %s483 = scalar_lea.vmem %s10, %s482
      $region60: #{encoding_model_forward.1} parent=23 // pred_fallthru
        _
      // Predicated region
      $region61: #{encoding_model_forward.1} parent=23 // pred_check
        %p484 = pneg %p316
      $region62: #{encoding_model_forward.1} parent=23 // pred_check_branch
        %486 = sbr.rel (%p484) target = $region64
      $region63: #{encoding_model_forward.1} parent=23 // pred_region
        %p487 = scmp.lt.s32.totalorder %s20, 1
        %s488 = scalar_select %p487, %s20, 1
        %s489 = scalar_lea.vmem %s11, %s488
      $region64: #{encoding_model_forward.1} parent=23 // pred_fallthru
        _
      // Predicated region
      $region65: #{encoding_model_forward.1} parent=23 // pred_check
        %p490 = pneg %p342
      $region66: #{encoding_model_forward.1} parent=23 // pred_check_branch
        %492 = sbr.rel (%p490) target = $region68
      $region67: #{encoding_model_forward.1} parent=23 // pred_region
        %p493 = scmp.lt.s32.totalorder %s20, 1
        %s494 = scalar_select %p493, %s20, 1
        %s495 = scalar_lea.vmem %s12, %s494
      $region68: #{encoding_model_forward.1} parent=23 // pred_fallthru
        _
      // Predicated region
      $region69: #{encoding_model_forward.1} parent=23 // pred_check
        %p496 = pneg %p368
      $region70: #{encoding_model_forward.1} parent=23 // pred_check_branch
        %498 = sbr.rel (%p496) target = $region72
      $region71: #{encoding_model_forward.1} parent=23 // pred_region
        %p499 = scmp.lt.s32.totalorder %s20, 1
        %s500 = scalar_select %p499, %s20, 1
        %s501 = scalar_lea.vmem %s13, %s500
      $region72: #{encoding_model_forward.1} parent=23 // pred_fallthru
        _
    $region24: #{encoding_model_forward.1} parent=5 // pred_fallthru
      _
    %p502 = scmp.le.s32.totalorder 1, %s20
    %p503 = scmp.lt.s32.totalorder %s20, 3
    %p504 = pnand %p502, %p503
    %p505 = pneg %p504
    // Predicated region
    $region73: #{encoding_model_forward.1} parent=5 // pred_check
      _
    $region74: #{encoding_model_forward.1} parent=5 // pred_check_branch
      %507 = sbr.rel (%p504) target = $region76
    $region75: #{encoding_model_forward.1} parent=5 // pred_region
      %s508 = ssub.s32 %s20, 1
      %p509 = pneg %p41
      %p510 = pneg %p38
      %p511 = pneg %p62
      %p512 = pneg %p59
      %p513 = scmp.lt.s32.totalorder %s25, 1
      %s514 = scalar_select %p513, %s25, 1
      %s515 = smul.addr %s514, 48
      %s516 = smul.addr %s515, 4
      %s517 = scalar_lea.vmem %s2, %s516
      %p518 = pneg %p88
      %p519 = pneg %p85
      %p520 = scmp.lt.s32.totalorder %s25, 1
      %s521 = scalar_select %p520, %s25, 1
      %s522 = smul.addr %s521, 3
      %s523 = scalar_lea.vmem %s3, %s522
      %p524 = pneg %p114
      %p525 = pneg %p111
      %p526 = scmp.lt.s32.totalorder %s25, 1
      %s527 = scalar_select %p526, %s25, 1
      %s528 = smul.addr %s527, 16
      %s529 = smul.addr %s528, 4
      %s530 = scalar_lea.vmem %s4, %s529
      %p531 = pneg %p140
      %p532 = pneg %p137
      %p533 = scmp.lt.s32.totalorder %s25, 1
      %s534 = scalar_select %p533, %s25, 1
      %s535 = scalar_lea.vmem %s5, %s534
      %p536 = pneg %p166
      %p537 = pneg %p163
      %p538 = scmp.lt.s32.totalorder %s25, 1
      %s539 = scalar_select %p538, %s25, 1
      %s540 = scalar_lea.vmem %s6, %s539
      %p541 = pneg %p192
      %p542 = pneg %p189
      %p543 = scmp.lt.s32.totalorder %s25, 1
      %s544 = scalar_select %p543, %s25, 1
      %s545 = scalar_lea.vmem %s7, %s544
      %p546 = pneg %p218
      %p547 = pneg %p215
      %p548 = scmp.lt.s32.totalorder %s25, 1
      %s549 = scalar_select %p548, %s25, 1
      %s550 = smul.addr %s549, 32
      %s551 = smul.addr %s550, 4
      %s552 = scalar_lea.vmem %s8, %s551
      %p553 = pneg %p244
      %p554 = pneg %p241
      %p555 = scmp.lt.s32.totalorder %s25, 1
      %s556 = scalar_select %p555, %s25, 1
      %s557 = smul.addr %s556, 2
      %s558 = scalar_lea.vmem %s9, %s557
      %p559 = pneg %p270
      %p560 = pneg %p267
      %p561 = scmp.lt.s32.totalorder %s25, 1
      %s562 = scalar_select %p561, %s25, 1
      %s563 = smul.addr %s562, 32
      %s564 = smul.addr %s563, 4
      %s565 = scalar_lea.vmem %s10, %s564
      %p566 = pneg %p296
      %p567 = pneg %p293
      %p568 = scmp.lt.s32.totalorder %s25, 1
      %s569 = scalar_select %p568, %s25, 1
      %s570 = scalar_lea.vmem %s11, %s569
      %p571 = pneg %p322
      %p572 = pneg %p319
      %p573 = scmp.lt.s32.totalorder %s25, 1
      %s574 = scalar_select %p573, %s25, 1
      %s575 = scalar_lea.vmem %s12, %s574
      %p576 = pneg %p348
      %p577 = pneg %p345
      %p578 = scmp.lt.s32.totalorder %s25, 1
      %s579 = scalar_select %p578, %s25, 1
      %s580 = scalar_lea.vmem %s13, %s579
      %p581 = pneg %p374
      %p582 = pneg %p371
      %p583 = pneg %p395
      %p584 = pneg %p392
      %p585 = scmp.lt.s32.totalorder %s25, 1
      %s586 = scalar_select %p585, %s25, 1
      %s587 = smul.addr %s586, 48
      %s588 = smul.addr %s587, 4
      %s589 = scalar_lea.vmem %s2, %s588
      %p590 = scmp.lt.s32.totalorder %s25, 1
      %s591 = scalar_select %p590, %s25, 1
      %s592 = smul.addr %s591, 3
      %s593 = scalar_lea.vmem %s3, %s592
      %p594 = scmp.lt.s32.totalorder %s25, 1
      %s595 = scalar_select %p594, %s25, 1
      %s596 = smul.addr %s595, 16
      %s597 = smul.addr %s596, 4
      %s598 = scalar_lea.vmem %s4, %s597
      %p599 = scmp.lt.s32.totalorder %s25, 1
      %s600 = scalar_select %p599, %s25, 1
      %s601 = scalar_lea.vmem %s5, %s600
      %p602 = scmp.lt.s32.totalorder %s25, 1
      %s603 = scalar_select %p602, %s25, 1
      %s604 = scalar_lea.vmem %s6, %s603
      %p605 = scmp.lt.s32.totalorder %s25, 1
      %s606 = scalar_select %p605, %s25, 1
      %s607 = scalar_lea.vmem %s7, %s606
      %p608 = scmp.lt.s32.totalorder %s25, 1
      %s609 = scalar_select %p608, %s25, 1
      %s610 = smul.addr %s609, 32
      %s611 = smul.addr %s610, 4
      %s612 = scalar_lea.vmem %s8, %s611
      %p613 = scmp.lt.s32.totalorder %s25, 1
      %s614 = scalar_select %p613, %s25, 1
      %s615 = smul.addr %s614, 2
      %s616 = scalar_lea.vmem %s9, %s615
      %p617 = scmp.lt.s32.totalorder %s25, 1
      %s618 = scalar_select %p617, %s25, 1
      %s619 = smul.addr %s618, 32
      %s620 = smul.addr %s619, 4
      %s621 = scalar_lea.vmem %s10, %s620
      %p622 = scmp.lt.s32.totalorder %s25, 1
      %s623 = scalar_select %p622, %s25, 1
      %s624 = scalar_lea.vmem %s11, %s623
      %p625 = scmp.lt.s32.totalorder %s25, 1
      %s626 = scalar_select %p625, %s25, 1
      %s627 = scalar_lea.vmem %s12, %s626
      %p628 = scmp.lt.s32.totalorder %s25, 1
      %s629 = scalar_select %p628, %s25, 1
      %s630 = scalar_lea.vmem %s13, %s629
      %p632 = scmp.eq.s32.totalorder %s25, 0
      // Predicated region
      $region77: #{encoding_model_forward.1} parent=75 // pred_check
        %p633 = pneg %p632
      $region78: #{encoding_model_forward.1} parent=75 // pred_check_branch
        %635 = sbr.rel (%p633) target = $region80
      $region79: #{encoding_model_forward.1} parent=75 // pred_region
        %v636 = vld [vmem:[%s0] sm:$0xff]
        %v637 = vld [vmem:[%s0 + $0x8] sm:$0xff]
        %v638 = vld [vmem:[%s0 + $0x10] sm:$0xff]
        %v639 = vld [vmem:[%s0 + $0x18] sm:$0xff]
        %640 = vst [vmem:[%s14] sm:$0xff] %v636
        %641 = vst [vmem:[%s14 + $0x8] sm:$0xff] %v637
        %642 = vst [vmem:[%s14 + $0x10] sm:$0xff] %v638
        %643 = vst [vmem:[%s14 + $0x18] sm:$0xff] %v639
      $region80: #{encoding_model_forward.1} parent=75 // pred_fallthru
        _
      %v644 = vld [vmem:[%s14] sm:$0xff]
      %v645 = vld [vmem:[%s14 + $0x8] sm:$0xff]
      %v646 = vld [vmem:[%s14 + $0x10] sm:$0xff]
      %v647 = vld [vmem:[%s14 + $0x18] sm:$0xff]
      %v648 = vld [vmem:[%s1] sm:$0xff]
      %v649 = vld [vmem:[%s1 + $0x8] sm:$0xff]
      %v650 = vld [vmem:[%s1 + $0x10] sm:$0xff]
      %v651 = vld [vmem:[%s1 + $0x18] sm:$0xff]
      %v652 = vpack.c.bf16 %v645, %v644
      %v653 = vpack.c.bf16 %v647, %v646
      %v654 = vld [vmem:[%s589] sm:$0xff]
      %v655 = vld [vmem:[%s589 + $0x8] sm:$0xf]
      %v656 = vld [vmem:[%s589 + $0xc] sm:$0xff]
      %v657 = vld [vmem:[%s589 + $0x14] sm:$0xf]
      %v658 = vld [vmem:[%s589 + $0x18] sm:$0xff]
      %v659 = vld [vmem:[%s589 + $0x20] sm:$0xf]
      %v660 = vld [vmem:[%s589 + $0x24] sm:$0xff]
      %v661 = vld [vmem:[%s589 + $0x2c] sm:$0xf]
      %v662 = vld [vmem:[%s589 + $0x30] sm:$0xff]
      %v663 = vld [vmem:[%s589 + $0x38] sm:$0xf]
      %v664 = vld [vmem:[%s589 + $0x3c] sm:$0xff]
      %v665 = vld [vmem:[%s589 + $0x44] sm:$0xf]
      %v666 = vld [vmem:[%s589 + $0x48] sm:$0xff]
      %v667 = vld [vmem:[%s589 + $0x50] sm:$0xf]
      %v668 = vld [vmem:[%s589 + $0x54] sm:$0xff]
      %v669 = vld [vmem:[%s589 + $0x5c] sm:$0xf]
      %v670 = vld [vmem:[%s589 + $0x60] sm:$0xff]
      %v671 = vld [vmem:[%s589 + $0x68] sm:$0xf]
      %v672 = vld [vmem:[%s589 + $0x6c] sm:$0xff]
      %v673 = vld [vmem:[%s589 + $0x74] sm:$0xf]
      %v674 = vld [vmem:[%s589 + $0x78] sm:$0xff]
      %v675 = vld [vmem:[%s589 + $0x80] sm:$0xf]
      %v676 = vld [vmem:[%s589 + $0x84] sm:$0xff]
      %v677 = vld [vmem:[%s589 + $0x8c] sm:$0xf]
      %v678 = vld [vmem:[%s589 + $0x90] sm:$0xff]
      %v679 = vld [vmem:[%s589 + $0x98] sm:$0xf]
      %v680 = vld [vmem:[%s589 + $0x9c] sm:$0xff]
      %v681 = vld [vmem:[%s589 + $0xa4] sm:$0xf]
      %v682 = vld [vmem:[%s589 + $0xa8] sm:$0xff]
      %v683 = vld [vmem:[%s589 + $0xb0] sm:$0xf]
      %v684 = vld [vmem:[%s589 + $0xb4] sm:$0xff]
      %v685 = vld [vmem:[%s589 + $0xbc] sm:$0xf]
      %v686 = vld [vmem:[%s593] sm:$0x7]
      %v688 = vlaneseq
      %v689 = vshrl.u32 %v688, 7
      %v690 = vsub.s32 0, %v689
      %v691 = vrot.slane %v686, %v690
      %v692 = vlaneseq
      %v693 = vshrl.u32 %v692, 7
      %v694 = vsub.s32 1, %v693
      %v695 = vrot.slane %v686, %v694
      %v696 = vlaneseq
      %v697 = vshrl.u32 %v696, 7
      %v698 = vsub.s32 2, %v697
      %v699 = vrot.slane %v686, %v698
      %v735 = vunpack.c.l.b16 %v654
      %v736 = vunpack.c.h.b16 %v654
      %v737 = vunpack.c.l.b16 %v655
      %v738 = vunpack.c.l.b16 %v656
      %v739 = vunpack.c.h.b16 %v656
      %v740 = vunpack.c.l.b16 %v657
      %v741 = vunpack.c.l.b16 %v658
      %v742 = vunpack.c.h.b16 %v658
      %v743 = vunpack.c.l.b16 %v659
      %v744 = vunpack.c.l.b16 %v660
      %v745 = vunpack.c.h.b16 %v660
      %v746 = vunpack.c.l.b16 %v661
      %v747 = vunpack.c.l.b16 %v662
      %v748 = vunpack.c.h.b16 %v662
      %v749 = vunpack.c.l.b16 %v663
      %v750 = vunpack.c.l.b16 %v664
      %v751 = vunpack.c.h.b16 %v664
      %v752 = vunpack.c.l.b16 %v665
      %v753 = vunpack.c.l.b16 %v666
      %v754 = vunpack.c.h.b16 %v666
      %v755 = vunpack.c.l.b16 %v667
      %v756 = vunpack.c.l.b16 %v668
      %v757 = vunpack.c.h.b16 %v668
      %v758 = vunpack.c.l.b16 %v669
      %v759 = vunpack.c.l.b16 %v670
      %v760 = vunpack.c.h.b16 %v670
      %v761 = vunpack.c.l.b16 %v671
      %v762 = vunpack.c.l.b16 %v672
      %v763 = vunpack.c.h.b16 %v672
      %v764 = vunpack.c.l.b16 %v673
      %v765 = vunpack.c.l.b16 %v674
      %v766 = vunpack.c.h.b16 %v674
      %v767 = vunpack.c.l.b16 %v675
      %v768 = vunpack.c.l.b16 %v676
      %v769 = vunpack.c.h.b16 %v676
      %v770 = vunpack.c.l.b16 %v677
      %v771 = vunpack.c.l.b16 %v678
      %v772 = vunpack.c.h.b16 %v678
      %v773 = vunpack.c.l.b16 %v679
      %v774 = vunpack.c.l.b16 %v680
      %v775 = vunpack.c.h.b16 %v680
      %v776 = vunpack.c.l.b16 %v681
      %v777 = vunpack.c.l.b16 %v682
      %v778 = vunpack.c.h.b16 %v682
      %v779 = vunpack.c.l.b16 %v683
      %v780 = vunpack.c.l.b16 %v684
      %v781 = vunpack.c.h.b16 %v684
      %v782 = vunpack.c.l.b16 %v685
      %v783 = vpack.c.b16 %v738, %v735
      %v784 = vpack.c.b16 %v739, %v736
      %v785 = vpack.c.b16 %v740, %v737
      %v786 = vpack.c.b16 %v744, %v741
      %v787 = vpack.c.b16 %v745, %v742
      %v788 = vpack.c.b16 %v746, %v743
      %v789 = vpack.c.b16 %v750, %v747
      %v790 = vpack.c.b16 %v751, %v748
      %v791 = vpack.c.b16 %v752, %v749
      %v792 = vpack.c.b16 %v756, %v753
      %v793 = vpack.c.b16 %v757, %v754
      %v794 = vpack.c.b16 %v758, %v755
      %v795 = vpack.c.b16 %v762, %v759
      %v796 = vpack.c.b16 %v763, %v760
      %v797 = vpack.c.b16 %v764, %v761
      %v798 = vpack.c.b16 %v768, %v765
      %v799 = vpack.c.b16 %v769, %v766
      %v800 = vpack.c.b16 %v770, %v767
      %v801 = vpack.c.b16 %v774, %v771
      %v802 = vpack.c.b16 %v775, %v772
      %v803 = vpack.c.b16 %v776, %v773
      %v804 = vpack.c.b16 %v780, %v777
      %v805 = vpack.c.b16 %v781, %v778
      %v806 = vpack.c.b16 %v782, %v779
      %831 = vmatprep.subr.bf16.mxu0 %v784
      %832 = vmatpush1.bf16.msra.mxu0 %v783
      %833 = vmatprep.subr.bf16.mxu0 %v787
      %834 = vmatpush1.bf16.msra.mxu0 %v786
      %835 = vmatprep.subr.bf16.mxu0 %v790
      %836 = vmatpush1.bf16.msra.mxu0 %v789
      %837 = vmatprep.subr.bf16.mxu0 %v793
      %838 = vmatpush1.bf16.msra.mxu0 %v792
      %839 = vmatprep.subr.bf16.mxu0 %v796
      %840 = vmatpush1.bf16.msra.mxu0 %v795
      %841 = vmatprep.subr.bf16.mxu0 %v799
      %842 = vmatpush1.bf16.msra.mxu0 %v798
      %843 = vmatprep.subr.bf16.mxu0 %v802
      %844 = vmatpush1.bf16.msra.mxu0 %v801
      %845 = vmatprep.subr.bf16.mxu0 %v805
      %846 = vmatpush1.bf16.msra.mxu0 %v804
      %847 = vmatprep.subr.bf16.mxu0 0
      %848 = vmatpush1.bf16.msra.mxu0 0
      %849 = vmatprep.subr.bf16.mxu0 0
      %850 = vmatpush1.bf16.msra.mxu0 0
      %851 = vmatprep.subr.bf16.mxu0 0
      %852 = vmatpush1.bf16.msra.mxu0 0
      %853 = vmatprep.subr.bf16.mxu0 0
      %854 = vmatpush1.bf16.msra.mxu0 0
      %855 = vmatprep.subr.bf16.mxu0 0
      %856 = vmatpush1.bf16.msra.mxu0 0
      %857 = vmatprep.subr.bf16.mxu0 0
      %858 = vmatpush1.bf16.msra.mxu0 0
      %859 = vmatprep.subr.bf16.mxu0 0
      %860 = vmatpush1.bf16.msra.mxu0 0
      %861 = vmatprep.subr.bf16.mxu0 0
      %862 = vmatpush1.bf16.msra.mxu0 0
      %863 = vmatprep.mubr.bf16.mxu0 0
      %864 = vmatmul.mubr.bf16.gmra.mrb[0].mxu0 %v652
      %v865 = vpop.f32.mrb[0].mxu0
      %v866 = vadd.f32 %v691, %v865
      %v867 = vpop.f32.mrb[0].mxu0
      %v868 = vadd.f32 %v695, %v867
      %v869 = vpop.f32.mrb[0].mxu0
      %v870 = vadd.f32 %v691, %v869
      %v871 = vpop.f32.mrb[0].mxu0
      %v872 = vadd.f32 %v695, %v871
      %873 = vmatprep.mubr.bf16.mxu0 0
      %874 = vmatmul.mubr.bf16.gmra.mrb[0].mxu0 %v653
      %v875 = vpop.f32.mrb[0].mxu0
      %v876 = vadd.f32 %v691, %v875
      %v877 = vpop.f32.mrb[0].mxu0
      %v878 = vadd.f32 %v695, %v877
      %v879 = vpop.f32.mrb[0].mxu0
      %v880 = vadd.f32 %v691, %v879
      %v881 = vpop.f32.mrb[0].mxu0
      %v882 = vadd.f32 %v695, %v881
      %883 = vdwg.mxu0
      %884 = vmatprep.subr.bf16.mxu0 0
      %885 = vmatpush1.bf16.msra.mxu0 %v785
      %886 = vmatprep.subr.bf16.mxu0 0
      %887 = vmatpush1.bf16.msra.mxu0 %v788
      %888 = vmatprep.subr.bf16.mxu0 0
      %889 = vmatpush1.bf16.msra.mxu0 %v791
      %890 = vmatprep.subr.bf16.mxu0 0
      %891 = vmatpush1.bf16.msra.mxu0 %v794
      %892 = vmatprep.subr.bf16.mxu0 0
      %893 = vmatpush1.bf16.msra.mxu0 %v797
      %894 = vmatprep.subr.bf16.mxu0 0
      %895 = vmatpush1.bf16.msra.mxu0 %v800
      %896 = vmatprep.subr.bf16.mxu0 0
      %897 = vmatpush1.bf16.msra.mxu0 %v803
      %898 = vmatprep.subr.bf16.mxu0 0
      %899 = vmatpush1.bf16.msra.mxu0 %v806
      %900 = vmatprep.subr.bf16.mxu0 0
      %901 = vmatpush1.bf16.msra.mxu0 0
      %902 = vmatprep.subr.bf16.mxu0 0
      %903 = vmatpush1.bf16.msra.mxu0 0
      %904 = vmatprep.subr.bf16.mxu0 0
      %905 = vmatpush1.bf16.msra.mxu0 0
      %906 = vmatprep.subr.bf16.mxu0 0
      %907 = vmatpush1.bf16.msra.mxu0 0
      %908 = vmatprep.subr.bf16.mxu0 0
      %909 = vmatpush1.bf16.msra.mxu0 0
      %910 = vmatprep.subr.bf16.mxu0 0
      %911 = vmatpush1.bf16.msra.mxu0 0
      %912 = vmatprep.subr.bf16.mxu0 0
      %913 = vmatpush1.bf16.msra.mxu0 0
      %914 = vmatprep.subr.bf16.mxu0 0
      %915 = vmatpush1.bf16.msra.mxu0 0
      %916 = vmatprep.mubr.bf16.mxu0 0
      %917 = vmatmul.mubr.bf16.gmra.mrb[0].mxu0 %v652
      %v918 = vpop.f32.mrb[0].mxu0
      %v919 = vadd.f32 %v699, %v918
      %v920 = vpop.f32.mrb[0].mxu0
      %v921 = vpop.f32.mrb[0].mxu0
      %v922 = vadd.f32 %v699, %v921
      %v923 = vpop.f32.mrb[0].mxu0
      %924 = vmatprep.mubr.bf16.mxu0 0
      %925 = vmatmul.mubr.bf16.gmra.mrb[0].mxu0 %v653
      %v926 = vpop.f32.mrb[0].mxu0
      %v927 = vadd.f32 %v699, %v926
      %v928 = vpop.f32.mrb[0].mxu0
      %v929 = vpop.f32.mrb[0].mxu0
      %v930 = vadd.f32 %v699, %v929
      %v931 = vpop.f32.mrb[0].mxu0
      %932 = vdwg.mxu0
      %v933 = vmul.f32 %v866, 0.17677669
      %v934 = vmul.f32 %v870, 0.17677669
      %v935 = vmul.f32 %v876, 0.17677669
      %v936 = vmul.f32 %v880, 0.17677669
      %v937 = vpack.c.bf16 %v934, %v933
      %v938 = vpack.c.bf16 %v936, %v935
      %939 = vxpose.xlu0.b32.start [1/16] %v868, 128
      %940 = vxpose.xlu0.b32.cont [2/16] %v872, 128
      %941 = vxpose.xlu0.b32.cont [3/16] %v878, 128
      %942 = vxpose.xlu0.b32.cont [4/16] %v882, 128
      %943 = vxpose.xlu0.b32.cont [5/16] 0.0, 128
      %944 = vxpose.xlu0.b32.cont [6/16] 0.0, 128
      %945 = vxpose.xlu0.b32.cont [7/16] 0.0, 128
      %946 = vxpose.xlu0.b32.cont [8/16] 0.0, 128
      %947 = vxpose.xlu0.b32.cont [9/16] 0.0, 128
      %948 = vxpose.xlu0.b32.cont [10/16] 0.0, 128
      %949 = vxpose.xlu0.b32.cont [11/16] 0.0, 128
      %950 = vxpose.xlu0.b32.cont [12/16] 0.0, 128
      %951 = vxpose.xlu0.b32.cont [13/16] 0.0, 128
      %952 = vxpose.xlu0.b32.cont [14/16] 0.0, 128
      %953 = vxpose.xlu0.b32.cont [15/16] 0.0, 128
      %954 = vxpose.xlu0.b32.end [16/16] 0.0, 128
      %v955 = vpop.trf.xlu0
      %v956 = vpop.trf.xlu0
      %v957 = vpop.trf.xlu0
      %v958 = vpop.trf.xlu0
      %v959 = vpop.trf.xlu0
      %v960 = vpop.trf.xlu0
      %v961 = vpop.trf.xlu0
      %v962 = vpop.trf.xlu0
      %v963 = vpop.trf.xlu0
      %v964 = vpop.trf.xlu0
      %v965 = vpop.trf.xlu0
      %v966 = vpop.trf.xlu0
      %v967 = vpop.trf.xlu0
      %v968 = vpop.trf.xlu0
      %v969 = vpop.trf.xlu0
      %v970 = vpop.trf.xlu0
      %v971 = vpack.c.bf16 %v956, %v955
      %v972 = vpack.c.bf16 %v958, %v957
      %v973 = vpack.c.bf16 %v960, %v959
      %v974 = vpack.c.bf16 %v962, %v961
      %v975 = vpack.c.bf16 %v964, %v963
      %v976 = vpack.c.bf16 %v966, %v965
      %v977 = vpack.c.bf16 %v968, %v967
      %v978 = vpack.c.bf16 %v970, %v969
      %v979 = vpack.c.bf16 %v922, %v919
      %v980 = vpack.c.bf16 %v930, %v927
      %v981 = vld [vmem:[%s598] sm:$0xf]
      %v982 = vld [vmem:[%s598 + $0x4] sm:$0xf]
      %v983 = vld [vmem:[%s598 + $0x8] sm:$0xf]
      %v984 = vld [vmem:[%s598 + $0xc] sm:$0xf]
      %v985 = vld [vmem:[%s598 + $0x10] sm:$0xf]
      %v986 = vld [vmem:[%s598 + $0x14] sm:$0xf]
      %v987 = vld [vmem:[%s598 + $0x18] sm:$0xf]
      %v988 = vld [vmem:[%s598 + $0x1c] sm:$0xf]
      %v989 = vld [vmem:[%s598 + $0x20] sm:$0xf]
      %v990 = vld [vmem:[%s598 + $0x24] sm:$0xf]
      %v991 = vld [vmem:[%s598 + $0x28] sm:$0xf]
      %v992 = vld [vmem:[%s598 + $0x2c] sm:$0xf]
      %v993 = vld [vmem:[%s598 + $0x30] sm:$0xf]
      %v994 = vld [vmem:[%s598 + $0x34] sm:$0xf]
      %v995 = vld [vmem:[%s598 + $0x38] sm:$0xf]
      %v996 = vld [vmem:[%s598 + $0x3c] sm:$0xf]
      %vm997 = vcmask 261120
      %v999 = vsel %vm997, %v937, 0
      %v1002 = vsel %vm997, %v938, 0
      %1004 = vmatprep.subr.bf16.mxu0 0
      %1005 = vmatpush1.bf16.msra.mxu0 %v971
      %1006 = vmatprep.subr.bf16.mxu0 0
      %1007 = vmatpush1.bf16.msra.mxu0 %v972
      %1008 = vmatprep.subr.bf16.mxu0 0
      %1009 = vmatpush1.bf16.msra.mxu0 0
      %1010 = vmatprep.subr.bf16.mxu0 0
      %1011 = vmatpush1.bf16.msra.mxu0 0
      %1012 = vmatprep.subr.bf16.mxu0 0
      %1013 = vmatpush1.bf16.msra.mxu0 0
      %1014 = vmatprep.subr.bf16.mxu0 0
      %1015 = vmatpush1.bf16.msra.mxu0 0
      %1016 = vmatprep.subr.bf16.mxu0 0
      %1017 = vmatpush1.bf16.msra.mxu0 0
      %1018 = vmatprep.subr.bf16.mxu0 0
      %1019 = vmatpush1.bf16.msra.mxu0 0
      %1020 = vmatprep.subr.bf16.mxu0 0
      %1021 = vmatpush1.bf16.msra.mxu0 0
      %1022 = vmatprep.subr.bf16.mxu0 0
      %1023 = vmatpush1.bf16.msra.mxu0 0
      %1024 = vmatprep.subr.bf16.mxu0 0
      %1025 = vmatpush1.bf16.msra.mxu0 0
      %1026 = vmatprep.subr.bf16.mxu0 0
      %1027 = vmatpush1.bf16.msra.mxu0 0
      %1028 = vmatprep.subr.bf16.mxu0 0
      %1029 = vmatpush1.bf16.msra.mxu0 0
      %1030 = vmatprep.subr.bf16.mxu0 0
      %1031 = vmatpush1.bf16.msra.mxu0 0
      %1032 = vmatprep.subr.bf16.mxu0 0
      %1033 = vmatpush1.bf16.msra.mxu0 0
      %1034 = vmatprep.subr.bf16.mxu0 0
      %1035 = vmatpush1.bf16.msra.mxu0 0
      %1036 = vmatprep.mubr.bf16.mxu0 0
      %1037 = vmatmul.mubr.bf16.gmra.mrb[0].mxu0 %v999
      %v1038 = vpop.f32.mrb[0].mxu0
      %v1039 = vadd.f32 %v648, %v1038
      %v1040 = vpop.f32.mrb[0].mxu0
      %v1041 = vpop.f32.mrb[0].mxu0
      %v1042 = vadd.f32 %v649, %v1041
      %v1043 = vpop.f32.mrb[0].mxu0
      %1044 = vmatprep.mubr.bf16.mxu0 0
      %1045 = vmatmul.mubr.bf16.gmra.mrb[0].mxu0 %v1002
      %v1046 = vpop.f32.mrb[0].mxu0
      %v1047 = vadd.f32 %v650, %v1046
      %v1048 = vpop.f32.mrb[0].mxu0
      %v1049 = vpop.f32.mrb[0].mxu0
      %v1050 = vadd.f32 %v651, %v1049
      %v1051 = vpop.f32.mrb[0].mxu0
      %1052 = vdwg.mxu0
      %v1053 = vsel %vm997, %v1039, -inf
      %1054 = vmax.xlane.f32.xlu0 %v1053
      %v1055 = vpop.xlane.xlu0 %1054
      %v1056 = vsel %vm997, %v1042, -inf
      %1057 = vmax.xlane.f32.xlu0 %v1056
      %v1058 = vpop.xlane.xlu0 %1057
      %v1059 = vsel %vm997, %v1047, -inf
      %1060 = vmax.xlane.f32.xlu0 %v1059
      %v1061 = vpop.xlane.xlu0 %1060
      %v1062 = vsel %vm997, %v1050, -inf
      %1063 = vmax.xlane.f32.xlu0 %v1062
      %v1064 = vpop.xlane.xlu0 %1063
      %v1065 = vsub.f32 %v1039, %v1055
      %v1066 = vsub.f32 %v1042, %v1058
      %v1067 = vsub.f32 %v1047, %v1061
      %v1068 = vsub.f32 %v1050, %v1064
      %v1069 = vmul.f32 %v1065, 1.442695
      %v1070 = vpow.pop %v1069
      %v1071 = vmul.f32 %v1066, 1.442695
      %v1072 = vpow.pop %v1071
      %v1073 = vmul.f32 %v1067, 1.442695
      %v1074 = vpow.pop %v1073
      %v1075 = vmul.f32 %v1068, 1.442695
      %v1076 = vpow.pop %v1075
      %v1077 = vsel %vm997, %v1070, 0.0
      %1078 = vadd.xlane.f32.xlu0 %v1077
      %v1079 = vpop.xlane.xlu0 %1078
      %v1080 = vsel %vm997, %v1072, 0.0
      %1081 = vadd.xlane.f32.xlu0 %v1080
      %v1082 = vpop.xlane.xlu0 %1081
      %v1083 = vsel %vm997, %v1074, 0.0
      %1084 = vadd.xlane.f32.xlu0 %v1083
      %v1085 = vpop.xlane.xlu0 %1084
      %v1086 = vsel %vm997, %v1076, 0.0
      %1087 = vadd.xlane.f32.xlu0 %v1086
      %v1088 = vpop.xlane.xlu0 %1087
      %v1089 = vrcp.pop %v1079
      %v1090 = vrcp.pop %v1082
      %v1091 = vrcp.pop %v1085
      %v1092 = vrcp.pop %v1088
      %v1093 = vmul.f32 %v1070, %v1089
      %v1094 = vmul.f32 %v1072, %v1090
      %v1095 = vmul.f32 %v1074, %v1091
      %v1096 = vmul.f32 %v1076, %v1092
      %v1097 = vpack.c.bf16 %v1094, %v1093
      %v1098 = vpack.c.bf16 %v1096, %v1095
      %v1100 = vsel %vm997, %v1097, 0
      %v1103 = vsel %vm997, %v1098, 0
      %1105 = vmatprep.subr.bf16.mxu0 0
      %1106 = vmatpush1.bf16.msra.mxu0 %v979
      %1107 = vmatprep.subr.bf16.mxu0 0
      %1108 = vmatpush1.bf16.msra.mxu0 %v980
      %1109 = vmatprep.subr.bf16.mxu0 0
      %1110 = vmatpush1.bf16.msra.mxu0 0
      %1111 = vmatprep.subr.bf16.mxu0 0
      %1112 = vmatpush1.bf16.msra.mxu0 0
      %1113 = vmatprep.subr.bf16.mxu0 0
      %1114 = vmatpush1.bf16.msra.mxu0 0
      %1115 = vmatprep.subr.bf16.mxu0 0
      %1116 = vmatpush1.bf16.msra.mxu0 0
      %1117 = vmatprep.subr.bf16.mxu0 0
      %1118 = vmatpush1.bf16.msra.mxu0 0
      %1119 = vmatprep.subr.bf16.mxu0 0
      %1120 = vmatpush1.bf16.msra.mxu0 0
      %1121 = vmatprep.subr.bf16.mxu0 0
      %1122 = vmatpush1.bf16.msra.mxu0 0
      %1123 = vmatprep.subr.bf16.mxu0 0
      %1124 = vmatpush1.bf16.msra.mxu0 0
      %1125 = vmatprep.subr.bf16.mxu0 0
      %1126 = vmatpush1.bf16.msra.mxu0 0
      %1127 = vmatprep.subr.bf16.mxu0 0
      %1128 = vmatpush1.bf16.msra.mxu0 0
      %1129 = vmatprep.subr.bf16.mxu0 0
      %1130 = vmatpush1.bf16.msra.mxu0 0
      %1131 = vmatprep.subr.bf16.mxu0 0
      %1132 = vmatpush1.bf16.msra.mxu0 0
      %1133 = vmatprep.subr.bf16.mxu0 0
      %1134 = vmatpush1.bf16.msra.mxu0 0
      %1135 = vmatprep.subr.bf16.mxu0 0
      %1136 = vmatpush1.bf16.msra.mxu0 0
      %1137 = vmatprep.mubr.bf16.mxu0 0
      %1138 = vmatmul.mubr.bf16.gmra.mrb[0].mxu0 %v1100
      %v1139 = vpop.f32.mrb[0].mxu0
      %v1140 = vadd.f32 0.0, %v1139
      %v1141 = vpop.f32.mrb[0].mxu0
      %v1142 = vpop.f32.mrb[0].mxu0
      %v1143 = vadd.f32 0.0, %v1142
      %v1144 = vpop.f32.mrb[0].mxu0
      %1145 = vmatprep.mubr.bf16.mxu0 0
      %1146 = vmatmul.mubr.bf16.gmra.mrb[0].mxu0 %v1103
      %v1147 = vpop.f32.mrb[0].mxu0
      %v1148 = vadd.f32 0.0, %v1147
      %v1149 = vpop.f32.mrb[0].mxu0
      %v1150 = vpop.f32.mrb[0].mxu0
      %v1151 = vadd.f32 0.0, %v1150
      %v1152 = vpop.f32.mrb[0].mxu0
      %1153 = vdwg.mxu0
      %v1154 = vpack.c.bf16 %v1143, %v1140
      %v1155 = vpack.c.bf16 %v1151, %v1148
      %1158 = vrot.lane.b32.xlu0 %v937, 96
      %v1159 = vpop.permute.xlu0 %1158
      %1160 = vrot.lane.b32.xlu0 %v938, 96
      %v1161 = vpop.permute.xlu0 %1160
      %v1163 = vsel %vm997, %v1159, 0
      %v1166 = vsel %vm997, %v1161, 0
      %1168 = vmatprep.subr.bf16.mxu0 0
      %1169 = vmatpush1.bf16.msra.mxu0 %v973
      %1170 = vmatprep.subr.bf16.mxu0 0
      %1171 = vmatpush1.bf16.msra.mxu0 %v974
      %1172 = vmatprep.subr.bf16.mxu0 0
      %1173 = vmatpush1.bf16.msra.mxu0 0
      %1174 = vmatprep.subr.bf16.mxu0 0
      %1175 = vmatpush1.bf16.msra.mxu0 0
      %1176 = vmatprep.subr.bf16.mxu0 0
      %1177 = vmatpush1.bf16.msra.mxu0 0
      %1178 = vmatprep.subr.bf16.mxu0 0
      %1179 = vmatpush1.bf16.msra.mxu0 0
      %1180 = vmatprep.subr.bf16.mxu0 0
      %1181 = vmatpush1.bf16.msra.mxu0 0
      %1182 = vmatprep.subr.bf16.mxu0 0
      %1183 = vmatpush1.bf16.msra.mxu0 0
      %1184 = vmatprep.subr.bf16.mxu0 0
      %1185 = vmatpush1.bf16.msra.mxu0 0
      %1186 = vmatprep.subr.bf16.mxu0 0
      %1187 = vmatpush1.bf16.msra.mxu0 0
      %1188 = vmatprep.subr.bf16.mxu0 0
      %1189 = vmatpush1.bf16.msra.mxu0 0
      %1190 = vmatprep.subr.bf16.mxu0 0
      %1191 = vmatpush1.bf16.msra.mxu0 0
      %1192 = vmatprep.subr.bf16.mxu0 0
      %1193 = vmatpush1.bf16.msra.mxu0 0
      %1194 = vmatprep.subr.bf16.mxu0 0
      %1195 = vmatpush1.bf16.msra.mxu0 0
      %1196 = vmatprep.subr.bf16.mxu0 0
      %1197 = vmatpush1.bf16.msra.mxu0 0
      %1198 = vmatprep.subr.bf16.mxu0 0
      %1199 = vmatpush1.bf16.msra.mxu0 0
      %1200 = vmatprep.mubr.bf16.mxu0 0
      %1201 = vmatmul.mubr.bf16.gmra.mrb[0].mxu0 %v1163
      %v1202 = vpop.f32.mrb[0].mxu0
      %v1203 = vadd.f32 %v648, %v1202
      %v1204 = vpop.f32.mrb[0].mxu0
      %v1205 = vpop.f32.mrb[0].mxu0
      %v1206 = vadd.f32 %v649, %v1205
      %v1207 = vpop.f32.mrb[0].mxu0
      %1208 = vmatprep.mubr.bf16.mxu0 0
      %1209 = vmatmul.mubr.bf16.gmra.mrb[0].mxu0 %v1166
      %v1210 = vpop.f32.mrb[0].mxu0
      %v1211 = vadd.f32 %v650, %v1210
      %v1212 = vpop.f32.mrb[0].mxu0
      %v1213 = vpop.f32.mrb[0].mxu0
      %v1214 = vadd.f32 %v651, %v1213
      %v1215 = vpop.f32.mrb[0].mxu0
      %1216 = vdwg.mxu0
      %v1217 = vsel %vm997, %v1203, -inf
      %1218 = vmax.xlane.f32.xlu0 %v1217
      %v1219 = vpop.xlane.xlu0 %1218
      %v1220 = vsel %vm997, %v1206, -inf
      %1221 = vmax.xlane.f32.xlu0 %v1220
      %v1222 = vpop.xlane.xlu0 %1221
      %v1223 = vsel %vm997, %v1211, -inf
      %1224 = vmax.xlane.f32.xlu0 %v1223
      %v1225 = vpop.xlane.xlu0 %1224
      %v1226 = vsel %vm997, %v1214, -inf
      %1227 = vmax.xlane.f32.xlu0 %v1226
      %v1228 = vpop.xlane.xlu0 %1227
      %v1229 = vsub.f32 %v1203, %v1219
      %v1230 = vsub.f32 %v1206, %v1222
      %v1231 = vsub.f32 %v1211, %v1225
      %v1232 = vsub.f32 %v1214, %v1228
      %v1233 = vmul.f32 %v1229, 1.442695
      %v1234 = vpow.pop %v1233
      %v1235 = vmul.f32 %v1230, 1.442695
      %v1236 = vpow.pop %v1235
      %v1237 = vmul.f32 %v1231, 1.442695
      %v1238 = vpow.pop %v1237
      %v1239 = vmul.f32 %v1232, 1.442695
      %v1240 = vpow.pop %v1239
      %v1241 = vsel %vm997, %v1234, 0.0
      %1242 = vadd.xlane.f32.xlu0 %v1241
      %v1243 = vpop.xlane.xlu0 %1242
      %v1244 = vsel %vm997, %v1236, 0.0
      %1245 = vadd.xlane.f32.xlu0 %v1244
      %v1246 = vpop.xlane.xlu0 %1245
      %v1247 = vsel %vm997, %v1238, 0.0
      %1248 = vadd.xlane.f32.xlu0 %v1247
      %v1249 = vpop.xlane.xlu0 %1248
      %v1250 = vsel %vm997, %v1240, 0.0
      %1251 = vadd.xlane.f32.xlu0 %v1250
      %v1252 = vpop.xlane.xlu0 %1251
      %v1253 = vrcp.pop %v1243
      %v1254 = vrcp.pop %v1246
      %v1255 = vrcp.pop %v1249
      %v1256 = vrcp.pop %v1252
      %v1257 = vmul.f32 %v1234, %v1253
      %v1258 = vmul.f32 %v1236, %v1254
      %v1259 = vmul.f32 %v1238, %v1255
      %v1260 = vmul.f32 %v1240, %v1256
      %v1261 = vpack.c.bf16 %v1258, %v1257
      %v1262 = vpack.c.bf16 %v1260, %v1259
      %1265 = vrot.lane.b32.xlu0 %v979, 96
      %v1266 = vpop.permute.xlu0 %1265
      %1267 = vrot.lane.b32.xlu0 %v980, 96
      %v1268 = vpop.permute.xlu0 %1267
      %v1272 = vsel %vm997, %v1261, 0
      %v1275 = vsel %vm997, %v1262, 0
      %1277 = vmatprep.subr.bf16.mxu0 0
      %1278 = vmatpush1.bf16.msra.mxu0 %v1266
      %1279 = vmatprep.subr.bf16.mxu0 0
      %1280 = vmatpush1.bf16.msra.mxu0 %v1268
      %1281 = vmatprep.subr.bf16.mxu0 0
      %1282 = vmatpush1.bf16.msra.mxu0 0
      %1283 = vmatprep.subr.bf16.mxu0 0
      %1284 = vmatpush1.bf16.msra.mxu0 0
      %1285 = vmatprep.subr.bf16.mxu0 0
      %1286 = vmatpush1.bf16.msra.mxu0 0
      %1287 = vmatprep.subr.bf16.mxu0 0
      %1288 = vmatpush1.bf16.msra.mxu0 0
      %1289 = vmatprep.subr.bf16.mxu0 0
      %1290 = vmatpush1.bf16.msra.mxu0 0
      %1291 = vmatprep.subr.bf16.mxu0 0
      %1292 = vmatpush1.bf16.msra.mxu0 0
      %1293 = vmatprep.subr.bf16.mxu0 0
      %1294 = vmatpush1.bf16.msra.mxu0 0
      %1295 = vmatprep.subr.bf16.mxu0 0
      %1296 = vmatpush1.bf16.msra.mxu0 0
      %1297 = vmatprep.subr.bf16.mxu0 0
      %1298 = vmatpush1.bf16.msra.mxu0 0
      %1299 = vmatprep.subr.bf16.mxu0 0
      %1300 = vmatpush1.bf16.msra.mxu0 0
      %1301 = vmatprep.subr.bf16.mxu0 0
      %1302 = vmatpush1.bf16.msra.mxu0 0
      %1303 = vmatprep.subr.bf16.mxu0 0
      %1304 = vmatpush1.bf16.msra.mxu0 0
      %1305 = vmatprep.subr.bf16.mxu0 0
      %1306 = vmatpush1.bf16.msra.mxu0 0
      %1307 = vmatprep.subr.bf16.mxu0 0
      %1308 = vmatpush1.bf16.msra.mxu0 0
      %1309 = vmatprep.mubr.bf16.mxu0 0
      %1310 = vmatmul.mubr.bf16.gmra.mrb[0].mxu0 %v1272
      %v1311 = vpop.f32.mrb[0].mxu0
      %v1312 = vadd.f32 0.0, %v1311
      %v1313 = vpop.f32.mrb[0].mxu0
      %v1314 = vpop.f32.mrb[0].mxu0
      %v1315 = vadd.f32 0.0, %v1314
      %v1316 = vpop.f32.mrb[0].mxu0
      %1317 = vmatprep.mubr.bf16.mxu0 0
      %1318 = vmatmul.mubr.bf16.gmra.mrb[0].mxu0 %v1275
      %v1319 = vpop.f32.mrb[0].mxu0
      %v1320 = vadd.f32 0.0, %v1319
      %v1321 = vpop.f32.mrb[0].mxu0
      %v1322 = vpop.f32.mrb[0].mxu0
      %v1323 = vadd.f32 0.0, %v1322
      %v1324 = vpop.f32.mrb[0].mxu0
      %1325 = vdwg.mxu0
      %v1326 = vpack.c.bf16 %v1315, %v1312
      %v1327 = vpack.c.bf16 %v1323, %v1320
      %v1332 = vunpack.c.l.b16 %v985
      %v1333 = vunpack.c.l.b16 %v986
      %v1334 = vunpack.c.l.b16 %v987
      %v1335 = vunpack.c.l.b16 %v988
      %v1336 = vpack.c.b16 %v1333, %v1332
      %v1337 = vpack.c.b16 %v1335, %v1334
      %v1341 = vsel %vm997, %v1326, 0
      %v1344 = vsel %vm997, %v1327, 0
      %1346 = vmatprep.subr.bf16.mxu0 0
      %1347 = vmatpush1.bf16.msra.mxu0 %v1336
      %1348 = vmatprep.subr.bf16.mxu0 0
      %1349 = vmatpush1.bf16.msra.mxu0 %v1337
      %1350 = vmatprep.subr.bf16.mxu0 0
      %1351 = vmatpush1.bf16.msra.mxu0 0
      %1352 = vmatprep.subr.bf16.mxu0 0
      %1353 = vmatpush1.bf16.msra.mxu0 0
      %1354 = vmatprep.subr.bf16.mxu0 0
      %1355 = vmatpush1.bf16.msra.mxu0 0
      %1356 = vmatprep.subr.bf16.mxu0 0
      %1357 = vmatpush1.bf16.msra.mxu0 0
      %1358 = vmatprep.subr.bf16.mxu0 0
      %1359 = vmatpush1.bf16.msra.mxu0 0
      %1360 = vmatprep.subr.bf16.mxu0 0
      %1361 = vmatpush1.bf16.msra.mxu0 0
      %1362 = vmatprep.subr.bf16.mxu0 0
      %1363 = vmatpush1.bf16.msra.mxu0 0
      %1364 = vmatprep.subr.bf16.mxu0 0
      %1365 = vmatpush1.bf16.msra.mxu0 0
      %1366 = vmatprep.subr.bf16.mxu0 0
      %1367 = vmatpush1.bf16.msra.mxu0 0
      %1368 = vmatprep.subr.bf16.mxu0 0
      %1369 = vmatpush1.bf16.msra.mxu0 0
      %1370 = vmatprep.subr.bf16.mxu0 0
      %1371 = vmatpush1.bf16.msra.mxu0 0
      %1372 = vmatprep.subr.bf16.mxu0 0
      %1373 = vmatpush1.bf16.msra.mxu0 0
      %1374 = vmatprep.subr.bf16.mxu0 0
      %1375 = vmatpush1.bf16.msra.mxu0 0
      %1376 = vmatprep.subr.bf16.mxu0 0
      %1377 = vmatpush1.bf16.msra.mxu0 0
      %1378 = vmatprep.mubr.bf16.mxu0 0
      %1379 = vmatmul.mubr.bf16.gmra.mrb[0].mxu0 %v1341
      %v1380 = vpop.f32.mrb[0].mxu0
      %v1381 = vadd.f32 0.0, %v1380
      %v1382 = vpop.f32.mrb[0].mxu0
      %v1383 = vpop.f32.mrb[0].mxu0
      %v1384 = vadd.f32 0.0, %v1383
      %v1385 = vpop.f32.mrb[0].mxu0
      %1386 = vmatprep.mubr.bf16.mxu0 0
      %1387 = vmatmul.mubr.bf16.gmra.mrb[0].mxu0 %v1344
      %v1388 = vpop.f32.mrb[0].mxu0
      %v1389 = vadd.f32 0.0, %v1388
      %v1390 = vpop.f32.mrb[0].mxu0
      %v1391 = vpop.f32.mrb[0].mxu0
      %v1392 = vadd.f32 0.0, %v1391
      %v1393 = vpop.f32.mrb[0].mxu0
      %1394 = vdwg.mxu0
      %v1399 = vunpack.c.l.b16 %v981
      %v1400 = vunpack.c.l.b16 %v982
      %v1401 = vunpack.c.l.b16 %v983
      %v1402 = vunpack.c.l.b16 %v984
      %v1403 = vpack.c.b16 %v1400, %v1399
      %v1404 = vpack.c.b16 %v1402, %v1401
      %v1408 = vsel %vm997, %v1154, 0
      %v1411 = vsel %vm997, %v1155, 0
      %1413 = vmatprep.subr.bf16.mxu0 0
      %1414 = vmatpush1.bf16.msra.mxu0 %v1403
      %1415 = vmatprep.subr.bf16.mxu0 0
      %1416 = vmatpush1.bf16.msra.mxu0 %v1404
      %1417 = vmatprep.subr.bf16.mxu0 0
      %1418 = vmatpush1.bf16.msra.mxu0 0
      %1419 = vmatprep.subr.bf16.mxu0 0
      %1420 = vmatpush1.bf16.msra.mxu0 0
      %1421 = vmatprep.subr.bf16.mxu0 0
      %1422 = vmatpush1.bf16.msra.mxu0 0
      %1423 = vmatprep.subr.bf16.mxu0 0
      %1424 = vmatpush1.bf16.msra.mxu0 0
      %1425 = vmatprep.subr.bf16.mxu0 0
      %1426 = vmatpush1.bf16.msra.mxu0 0
      %1427 = vmatprep.subr.bf16.mxu0 0
      %1428 = vmatpush1.bf16.msra.mxu0 0
      %1429 = vmatprep.subr.bf16.mxu0 0
      %1430 = vmatpush1.bf16.msra.mxu0 0
      %1431 = vmatprep.subr.bf16.mxu0 0
      %1432 = vmatpush1.bf16.msra.mxu0 0
      %1433 = vmatprep.subr.bf16.mxu0 0
      %1434 = vmatpush1.bf16.msra.mxu0 0
      %1435 = vmatprep.subr.bf16.mxu0 0
      %1436 = vmatpush1.bf16.msra.mxu0 0
      %1437 = vmatprep.subr.bf16.mxu0 0
      %1438 = vmatpush1.bf16.msra.mxu0 0
      %1439 = vmatprep.subr.bf16.mxu0 0
      %1440 = vmatpush1.bf16.msra.mxu0 0
      %1441 = vmatprep.subr.bf16.mxu0 0
      %1442 = vmatpush1.bf16.msra.mxu0 0
      %1443 = vmatprep.subr.bf16.mxu0 0
      %1444 = vmatpush1.bf16.msra.mxu0 0
      %1445 = vmatprep.mubr.bf16.mxu0 0
      %1446 = vmatmul.mubr.bf16.gmra.mrb[0].mxu0 %v1408
      %v1447 = vpop.f32.mrb[0].mxu0
      %v1448 = vadd.f32 %v1381, %v1447
      %v1449 = vpop.f32.mrb[0].mxu0
      %v1450 = vpop.f32.mrb[0].mxu0
      %v1451 = vadd.f32 %v1384, %v1450
      %v1452 = vpop.f32.mrb[0].mxu0
      %1453 = vmatprep.mubr.bf16.mxu0 0
      %1454 = vmatmul.mubr.bf16.gmra.mrb[0].mxu0 %v1411
      %v1455 = vpop.f32.mrb[0].mxu0
      %v1456 = vadd.f32 %v1389, %v1455
      %v1457 = vpop.f32.mrb[0].mxu0
      %v1458 = vpop.f32.mrb[0].mxu0
      %v1459 = vadd.f32 %v1392, %v1458
      %v1460 = vpop.f32.mrb[0].mxu0
      %1461 = vdwg.mxu0
      %1462 = vrot.lane.b32.xlu0 %v937, 64
      %v1463 = vpop.permute.xlu0 %1462
      %1464 = vrot.lane.b32.xlu0 %v938, 64
      %v1465 = vpop.permute.xlu0 %1464
      %v1467 = vsel %vm997, %v1463, 0
      %v1470 = vsel %vm997, %v1465, 0
      %1472 = vmatprep.subr.bf16.mxu0 0
      %1473 = vmatpush1.bf16.msra.mxu0 %v975
      %1474 = vmatprep.subr.bf16.mxu0 0
      %1475 = vmatpush1.bf16.msra.mxu0 %v976
      %1476 = vmatprep.subr.bf16.mxu0 0
      %1477 = vmatpush1.bf16.msra.mxu0 0
      %1478 = vmatprep.subr.bf16.mxu0 0
      %1479 = vmatpush1.bf16.msra.mxu0 0
      %1480 = vmatprep.subr.bf16.mxu0 0
      %1481 = vmatpush1.bf16.msra.mxu0 0
      %1482 = vmatprep.subr.bf16.mxu0 0
      %1483 = vmatpush1.bf16.msra.mxu0 0
      %1484 = vmatprep.subr.bf16.mxu0 0
      %1485 = vmatpush1.bf16.msra.mxu0 0
      %1486 = vmatprep.subr.bf16.mxu0 0
      %1487 = vmatpush1.bf16.msra.mxu0 0
      %1488 = vmatprep.subr.bf16.mxu0 0
      %1489 = vmatpush1.bf16.msra.mxu0 0
      %1490 = vmatprep.subr.bf16.mxu0 0
      %1491 = vmatpush1.bf16.msra.mxu0 0
      %1492 = vmatprep.subr.bf16.mxu0 0
      %1493 = vmatpush1.bf16.msra.mxu0 0
      %1494 = vmatprep.subr.bf16.mxu0 0
      %1495 = vmatpush1.bf16.msra.mxu0 0
      %1496 = vmatprep.subr.bf16.mxu0 0
      %1497 = vmatpush1.bf16.msra.mxu0 0
      %1498 = vmatprep.subr.bf16.mxu0 0
      %1499 = vmatpush1.bf16.msra.mxu0 0
      %1500 = vmatprep.subr.bf16.mxu0 0
      %1501 = vmatpush1.bf16.msra.mxu0 0
      %1502 = vmatprep.subr.bf16.mxu0 0
      %1503 = vmatpush1.bf16.msra.mxu0 0
      %1504 = vmatprep.mubr.bf16.mxu0 0
      %1505 = vmatmul.mubr.bf16.gmra.mrb[0].mxu0 %v1467
      %v1506 = vpop.f32.mrb[0].mxu0
      %v1507 = vadd.f32 %v648, %v1506
      %v1508 = vpop.f32.mrb[0].mxu0
      %v1509 = vpop.f32.mrb[0].mxu0
      %v1510 = vadd.f32 %v649, %v1509
      %v1511 = vpop.f32.mrb[0].mxu0
      %1512 = vmatprep.mubr.bf16.mxu0 0
      %1513 = vmatmul.mubr.bf16.gmra.mrb[0].mxu0 %v1470
      %v1514 = vpop.f32.mrb[0].mxu0
      %v1515 = vadd.f32 %v650, %v1514
      %v1516 = vpop.f32.mrb[0].mxu0
      %v1517 = vpop.f32.mrb[0].mxu0
      %v1518 = vadd.f32 %v651, %v1517
      %v1519 = vpop.f32.mrb[0].mxu0
      %1520 = vdwg.mxu0
      %v1521 = vsel %vm997, %v1507, -inf
      %1522 = vmax.xlane.f32.xlu0 %v1521
      %v1523 = vpop.xlane.xlu0 %1522
      %v1524 = vsel %vm997, %v1510, -inf
      %1525 = vmax.xlane.f32.xlu0 %v1524
      %v1526 = vpop.xlane.xlu0 %1525
      %v1527 = vsel %vm997, %v1515, -inf
      %1528 = vmax.xlane.f32.xlu0 %v1527
      %v1529 = vpop.xlane.xlu0 %1528
      %v1530 = vsel %vm997, %v1518, -inf
      %1531 = vmax.xlane.f32.xlu0 %v1530
      %v1532 = vpop.xlane.xlu0 %1531
      %v1533 = vsub.f32 %v1507, %v1523
      %v1534 = vsub.f32 %v1510, %v1526
      %v1535 = vsub.f32 %v1515, %v1529
      %v1536 = vsub.f32 %v1518, %v1532
      %v1537 = vmul.f32 %v1533, 1.442695
      %v1538 = vpow.pop %v1537
      %v1539 = vmul.f32 %v1534, 1.442695
      %v1540 = vpow.pop %v1539
      %v1541 = vmul.f32 %v1535, 1.442695
      %v1542 = vpow.pop %v1541
      %v1543 = vmul.f32 %v1536, 1.442695
      %v1544 = vpow.pop %v1543
      %v1545 = vsel %vm997, %v1538, 0.0
      %1546 = vadd.xlane.f32.xlu0 %v1545
      %v1547 = vpop.xlane.xlu0 %1546
      %v1548 = vsel %vm997, %v1540, 0.0
      %1549 = vadd.xlane.f32.xlu0 %v1548
      %v1550 = vpop.xlane.xlu0 %1549
      %v1551 = vsel %vm997, %v1542, 0.0
      %1552 = vadd.xlane.f32.xlu0 %v1551
      %v1553 = vpop.xlane.xlu0 %1552
      %v1554 = vsel %vm997, %v1544, 0.0
      %1555 = vadd.xlane.f32.xlu0 %v1554
      %v1556 = vpop.xlane.xlu0 %1555
      %v1557 = vrcp.pop %v1547
      %v1558 = vrcp.pop %v1550
      %v1559 = vrcp.pop %v1553
      %v1560 = vrcp.pop %v1556
      %v1561 = vmul.f32 %v1538, %v1557
      %v1562 = vmul.f32 %v1540, %v1558
      %v1563 = vmul.f32 %v1542, %v1559
      %v1564 = vmul.f32 %v1544, %v1560
      %v1565 = vpack.c.bf16 %v1562, %v1561
      %v1566 = vpack.c.bf16 %v1564, %v1563
      %1567 = vrot.lane.b32.xlu0 %v979, 64
      %v1568 = vpop.permute.xlu0 %1567
      %1569 = vrot.lane.b32.xlu0 %v980, 64
      %v1570 = vpop.permute.xlu0 %1569
      %v1574 = vsel %vm997, %v1565, 0
      %v1577 = vsel %vm997, %v1566, 0
      %1579 = vmatprep.subr.bf16.mxu0 0
      %1580 = vmatpush1.bf16.msra.mxu0 %v1568
      %1581 = vmatprep.subr.bf16.mxu0 0
      %1582 = vmatpush1.bf16.msra.mxu0 %v1570
      %1583 = vmatprep.subr.bf16.mxu0 0
      %1584 = vmatpush1.bf16.msra.mxu0 0
      %1585 = vmatprep.subr.bf16.mxu0 0
      %1586 = vmatpush1.bf16.msra.mxu0 0
      %1587 = vmatprep.subr.bf16.mxu0 0
      %1588 = vmatpush1.bf16.msra.mxu0 0
      %1589 = vmatprep.subr.bf16.mxu0 0
      %1590 = vmatpush1.bf16.msra.mxu0 0
      %1591 = vmatprep.subr.bf16.mxu0 0
      %1592 = vmatpush1.bf16.msra.mxu0 0
      %1593 = vmatprep.subr.bf16.mxu0 0
      %1594 = vmatpush1.bf16.msra.mxu0 0
      %1595 = vmatprep.subr.bf16.mxu0 0
      %1596 = vmatpush1.bf16.msra.mxu0 0
      %1597 = vmatprep.subr.bf16.mxu0 0
      %1598 = vmatpush1.bf16.msra.mxu0 0
      %1599 = vmatprep.subr.bf16.mxu0 0
      %1600 = vmatpush1.bf16.msra.mxu0 0
      %1601 = vmatprep.subr.bf16.mxu0 0
      %1602 = vmatpush1.bf16.msra.mxu0 0
      %1603 = vmatprep.subr.bf16.mxu0 0
      %1604 = vmatpush1.bf16.msra.mxu0 0
      %1605 = vmatprep.subr.bf16.mxu0 0
      %1606 = vmatpush1.bf16.msra.mxu0 0
      %1607 = vmatprep.subr.bf16.mxu0 0
      %1608 = vmatpush1.bf16.msra.mxu0 0
      %1609 = vmatprep.subr.bf16.mxu0 0
      %1610 = vmatpush1.bf16.msra.mxu0 0
      %1611 = vmatprep.mubr.bf16.mxu0 0
      %1612 = vmatmul.mubr.bf16.gmra.mrb[0].mxu0 %v1574
      %v1613 = vpop.f32.mrb[0].mxu0
      %v1614 = vadd.f32 0.0, %v1613
      %v1615 = vpop.f32.mrb[0].mxu0
      %v1616 = vpop.f32.mrb[0].mxu0
      %v1617 = vadd.f32 0.0, %v1616
      %v1618 = vpop.f32.mrb[0].mxu0
      %1619 = vmatprep.mubr.bf16.mxu0 0
      %1620 = vmatmul.mubr.bf16.gmra.mrb[0].mxu0 %v1577
      %v1621 = vpop.f32.mrb[0].mxu0
      %v1622 = vadd.f32 0.0, %v1621
      %v1623 = vpop.f32.mrb[0].mxu0
      %v1624 = vpop.f32.mrb[0].mxu0
      %v1625 = vadd.f32 0.0, %v1624
      %v1626 = vpop.f32.mrb[0].mxu0
      %1627 = vdwg.mxu0
      %v1628 = vpack.c.bf16 %v1617, %v1614
      %v1629 = vpack.c.bf16 %v1625, %v1622
      %v1634 = vunpack.c.l.b16 %v989
      %v1635 = vunpack.c.l.b16 %v990
      %v1636 = vunpack.c.l.b16 %v991
      %v1637 = vunpack.c.l.b16 %v992
      %v1638 = vpack.c.b16 %v1635, %v1634
      %v1639 = vpack.c.b16 %v1637, %v1636
      %v1643 = vsel %vm997, %v1628, 0
      %v1646 = vsel %vm997, %v1629, 0
      %1648 = vmatprep.subr.bf16.mxu0 0
      %1649 = vmatpush1.bf16.msra.mxu0 %v1638
      %1650 = vmatprep.subr.bf16.mxu0 0
      %1651 = vmatpush1.bf16.msra.mxu0 %v1639
      %1652 = vmatprep.subr.bf16.mxu0 0
      %1653 = vmatpush1.bf16.msra.mxu0 0
      %1654 = vmatprep.subr.bf16.mxu0 0
      %1655 = vmatpush1.bf16.msra.mxu0 0
      %1656 = vmatprep.subr.bf16.mxu0 0
      %1657 = vmatpush1.bf16.msra.mxu0 0
      %1658 = vmatprep.subr.bf16.mxu0 0
      %1659 = vmatpush1.bf16.msra.mxu0 0
      %1660 = vmatprep.subr.bf16.mxu0 0
      %1661 = vmatpush1.bf16.msra.mxu0 0
      %1662 = vmatprep.subr.bf16.mxu0 0
      %1663 = vmatpush1.bf16.msra.mxu0 0
      %1664 = vmatprep.subr.bf16.mxu0 0
      %1665 = vmatpush1.bf16.msra.mxu0 0
      %1666 = vmatprep.subr.bf16.mxu0 0
      %1667 = vmatpush1.bf16.msra.mxu0 0
      %1668 = vmatprep.subr.bf16.mxu0 0
      %1669 = vmatpush1.bf16.msra.mxu0 0
      %1670 = vmatprep.subr.bf16.mxu0 0
      %1671 = vmatpush1.bf16.msra.mxu0 0
      %1672 = vmatprep.subr.bf16.mxu0 0
      %1673 = vmatpush1.bf16.msra.mxu0 0
      %1674 = vmatprep.subr.bf16.mxu0 0
      %1675 = vmatpush1.bf16.msra.mxu0 0
      %1676 = vmatprep.subr.bf16.mxu0 0
      %1677 = vmatpush1.bf16.msra.mxu0 0
      %1678 = vmatprep.subr.bf16.mxu0 0
      %1679 = vmatpush1.bf16.msra.mxu0 0
      %1680 = vmatprep.mubr.bf16.mxu0 0
      %1681 = vmatmul.mubr.bf16.gmra.mrb[0].mxu0 %v1643
      %v1682 = vpop.f32.mrb[0].mxu0
      %v1683 = vadd.f32 0.0, %v1682
      %v1684 = vpop.f32.mrb[0].mxu0
      %v1685 = vpop.f32.mrb[0].mxu0
      %v1686 = vadd.f32 0.0, %v1685
      %v1687 = vpop.f32.mrb[0].mxu0
      %1688 = vmatprep.mubr.bf16.mxu0 0
      %1689 = vmatmul.mubr.bf16.gmra.mrb[0].mxu0 %v1646
      %v1690 = vpop.f32.mrb[0].mxu0
      %v1691 = vadd.f32 0.0, %v1690
      %v1692 = vpop.f32.mrb[0].mxu0
      %v1693 = vpop.f32.mrb[0].mxu0
      %v1694 = vadd.f32 0.0, %v1693
      %v1695 = vpop.f32.mrb[0].mxu0
      %1696 = vdwg.mxu0
      %v1697 = vadd.f32 %v1448, %v1683
      %v1698 = vadd.f32 %v1451, %v1686
      %v1699 = vadd.f32 %v1456, %v1691
      %v1700 = vadd.f32 %v1459, %v1694
      %1701 = vrot.lane.b32.xlu0 %v937, 32
      %v1702 = vpop.permute.xlu0 %1701
      %1703 = vrot.lane.b32.xlu0 %v938, 32
      %v1704 = vpop.permute.xlu0 %1703
      %v1706 = vsel %vm997, %v1702, 0
      %v1709 = vsel %vm997, %v1704, 0
      %1711 = vmatprep.subr.bf16.mxu0 0
      %1712 = vmatpush1.bf16.msra.mxu0 %v977
      %1713 = vmatprep.subr.bf16.mxu0 0
      %1714 = vmatpush1.bf16.msra.mxu0 %v978
      %1715 = vmatprep.subr.bf16.mxu0 0
      %1716 = vmatpush1.bf16.msra.mxu0 0
      %1717 = vmatprep.subr.bf16.mxu0 0
      %1718 = vmatpush1.bf16.msra.mxu0 0
      %1719 = vmatprep.subr.bf16.mxu0 0
      %1720 = vmatpush1.bf16.msra.mxu0 0
      %1721 = vmatprep.subr.bf16.mxu0 0
      %1722 = vmatpush1.bf16.msra.mxu0 0
      %1723 = vmatprep.subr.bf16.mxu0 0
      %1724 = vmatpush1.bf16.msra.mxu0 0
      %1725 = vmatprep.subr.bf16.mxu0 0
      %1726 = vmatpush1.bf16.msra.mxu0 0
      %1727 = vmatprep.subr.bf16.mxu0 0
      %1728 = vmatpush1.bf16.msra.mxu0 0
      %1729 = vmatprep.subr.bf16.mxu0 0
      %1730 = vmatpush1.bf16.msra.mxu0 0
      %1731 = vmatprep.subr.bf16.mxu0 0
      %1732 = vmatpush1.bf16.msra.mxu0 0
      %1733 = vmatprep.subr.bf16.mxu0 0
      %1734 = vmatpush1.bf16.msra.mxu0 0
      %1735 = vmatprep.subr.bf16.mxu0 0
      %1736 = vmatpush1.bf16.msra.mxu0 0
      %1737 = vmatprep.subr.bf16.mxu0 0
      %1738 = vmatpush1.bf16.msra.mxu0 0
      %1739 = vmatprep.subr.bf16.mxu0 0
      %1740 = vmatpush1.bf16.msra.mxu0 0
      %1741 = vmatprep.subr.bf16.mxu0 0
      %1742 = vmatpush1.bf16.msra.mxu0 0
      %1743 = vmatprep.mubr.bf16.mxu0 0
      %1744 = vmatmul.mubr.bf16.gmra.mrb[0].mxu0 %v1706
      %v1745 = vpop.f32.mrb[0].mxu0
      %v1746 = vadd.f32 %v648, %v1745
      %v1747 = vpop.f32.mrb[0].mxu0
      %v1748 = vpop.f32.mrb[0].mxu0
      %v1749 = vadd.f32 %v649, %v1748
      %v1750 = vpop.f32.mrb[0].mxu0
      %1751 = vmatprep.mubr.bf16.mxu0 0
      %1752 = vmatmul.mubr.bf16.gmra.mrb[0].mxu0 %v1709
      %v1753 = vpop.f32.mrb[0].mxu0
      %v1754 = vadd.f32 %v650, %v1753
      %v1755 = vpop.f32.mrb[0].mxu0
      %v1756 = vpop.f32.mrb[0].mxu0
      %v1757 = vadd.f32 %v651, %v1756
      %v1758 = vpop.f32.mrb[0].mxu0
      %1759 = vdwg.mxu0
      %v1760 = vsel %vm997, %v1746, -inf
      %1761 = vmax.xlane.f32.xlu0 %v1760
      %v1762 = vpop.xlane.xlu0 %1761
      %v1763 = vsel %vm997, %v1749, -inf
      %1764 = vmax.xlane.f32.xlu0 %v1763
      %v1765 = vpop.xlane.xlu0 %1764
      %v1766 = vsel %vm997, %v1754, -inf
      %1767 = vmax.xlane.f32.xlu0 %v1766
      %v1768 = vpop.xlane.xlu0 %1767
      %v1769 = vsel %vm997, %v1757, -inf
      %1770 = vmax.xlane.f32.xlu0 %v1769
      %v1771 = vpop.xlane.xlu0 %1770
      %v1772 = vsub.f32 %v1746, %v1762
      %v1773 = vsub.f32 %v1749, %v1765
      %v1774 = vsub.f32 %v1754, %v1768
      %v1775 = vsub.f32 %v1757, %v1771
      %v1776 = vmul.f32 %v1772, 1.442695
      %v1777 = vpow.pop %v1776
      %v1778 = vmul.f32 %v1773, 1.442695
      %v1779 = vpow.pop %v1778
      %v1780 = vmul.f32 %v1774, 1.442695
      %v1781 = vpow.pop %v1780
      %v1782 = vmul.f32 %v1775, 1.442695
      %v1783 = vpow.pop %v1782
      %v1784 = vsel %vm997, %v1777, 0.0
      %1785 = vadd.xlane.f32.xlu0 %v1784
      %v1786 = vpop.xlane.xlu0 %1785
      %v1787 = vsel %vm997, %v1779, 0.0
      %1788 = vadd.xlane.f32.xlu0 %v1787
      %v1789 = vpop.xlane.xlu0 %1788
      %v1790 = vsel %vm997, %v1781, 0.0
      %1791 = vadd.xlane.f32.xlu0 %v1790
      %v1792 = vpop.xlane.xlu0 %1791
      %v1793 = vsel %vm997, %v1783, 0.0
      %1794 = vadd.xlane.f32.xlu0 %v1793
      %v1795 = vpop.xlane.xlu0 %1794
      %v1796 = vrcp.pop %v1786
      %v1797 = vrcp.pop %v1789
      %v1798 = vrcp.pop %v1792
      %v1799 = vrcp.pop %v1795
      %v1800 = vmul.f32 %v1777, %v1796
      %v1801 = vmul.f32 %v1779, %v1797
      %v1802 = vmul.f32 %v1781, %v1798
      %v1803 = vmul.f32 %v1783, %v1799
      %v1804 = vpack.c.bf16 %v1801, %v1800
      %v1805 = vpack.c.bf16 %v1803, %v1802
      %1806 = vrot.lane.b32.xlu0 %v979, 32
      %v1807 = vpop.permute.xlu0 %1806
      %1808 = vrot.lane.b32.xlu0 %v980, 32
      %v1809 = vpop.permute.xlu0 %1808
      %v1813 = vsel %vm997, %v1804, 0
      %v1816 = vsel %vm997, %v1805, 0
      %1818 = vmatprep.subr.bf16.mxu0 0
      %1819 = vmatpush1.bf16.msra.mxu0 %v1807
      %1820 = vmatprep.subr.bf16.mxu0 0
      %1821 = vmatpush1.bf16.msra.mxu0 %v1809
      %1822 = vmatprep.subr.bf16.mxu0 0
      %1823 = vmatpush1.bf16.msra.mxu0 0
      %1824 = vmatprep.subr.bf16.mxu0 0
      %1825 = vmatpush1.bf16.msra.mxu0 0
      %1826 = vmatprep.subr.bf16.mxu0 0
      %1827 = vmatpush1.bf16.msra.mxu0 0
      %1828 = vmatprep.subr.bf16.mxu0 0
      %1829 = vmatpush1.bf16.msra.mxu0 0
      %1830 = vmatprep.subr.bf16.mxu0 0
      %1831 = vmatpush1.bf16.msra.mxu0 0
      %1832 = vmatprep.subr.bf16.mxu0 0
      %1833 = vmatpush1.bf16.msra.mxu0 0
      %1834 = vmatprep.subr.bf16.mxu0 0
      %1835 = vmatpush1.bf16.msra.mxu0 0
      %1836 = vmatprep.subr.bf16.mxu0 0
      %1837 = vmatpush1.bf16.msra.mxu0 0
      %1838 = vmatprep.subr.bf16.mxu0 0
      %1839 = vmatpush1.bf16.msra.mxu0 0
      %1840 = vmatprep.subr.bf16.mxu0 0
      %1841 = vmatpush1.bf16.msra.mxu0 0
      %1842 = vmatprep.subr.bf16.mxu0 0
      %1843 = vmatpush1.bf16.msra.mxu0 0
      %1844 = vmatprep.subr.bf16.mxu0 0
      %1845 = vmatpush1.bf16.msra.mxu0 0
      %1846 = vmatprep.subr.bf16.mxu0 0
      %1847 = vmatpush1.bf16.msra.mxu0 0
      %1848 = vmatprep.subr.bf16.mxu0 0
      %1849 = vmatpush1.bf16.msra.mxu0 0
      %1850 = vmatprep.mubr.bf16.mxu0 0
      %1851 = vmatmul.mubr.bf16.gmra.mrb[0].mxu0 %v1813
      %v1852 = vpop.f32.mrb[0].mxu0
      %v1853 = vadd.f32 0.0, %v1852
      %v1854 = vpop.f32.mrb[0].mxu0
      %v1855 = vpop.f32.mrb[0].mxu0
      %v1856 = vadd.f32 0.0, %v1855
      %v1857 = vpop.f32.mrb[0].mxu0
      %1858 = vmatprep.mubr.bf16.mxu0 0
      %1859 = vmatmul.mubr.bf16.gmra.mrb[0].mxu0 %v1816
      %v1860 = vpop.f32.mrb[0].mxu0
      %v1861 = vadd.f32 0.0, %v1860
      %v1862 = vpop.f32.mrb[0].mxu0
      %v1863 = vpop.f32.mrb[0].mxu0
      %v1864 = vadd.f32 0.0, %v1863
      %v1865 = vpop.f32.mrb[0].mxu0
      %1866 = vdwg.mxu0
      %v1867 = vpack.c.bf16 %v1856, %v1853
      %v1868 = vpack.c.bf16 %v1864, %v1861
      %v1873 = vunpack.c.l.b16 %v993
      %v1874 = vunpack.c.l.b16 %v994
      %v1875 = vunpack.c.l.b16 %v995
      %v1876 = vunpack.c.l.b16 %v996
      %v1877 = vpack.c.b16 %v1874, %v1873
      %v1878 = vpack.c.b16 %v1876, %v1875
      %v1882 = vsel %vm997, %v1867, 0
      %v1885 = vsel %vm997, %v1868, 0
      %1887 = vmatprep.subr.bf16.mxu0 0
      %1888 = vmatpush1.bf16.msra.mxu0 %v1877
      %1889 = vmatprep.subr.bf16.mxu0 0
      %1890 = vmatpush1.bf16.msra.mxu0 %v1878
      %1891 = vmatprep.subr.bf16.mxu0 0
      %1892 = vmatpush1.bf16.msra.mxu0 0
      %1893 = vmatprep.subr.bf16.mxu0 0
      %1894 = vmatpush1.bf16.msra.mxu0 0
      %1895 = vmatprep.subr.bf16.mxu0 0
      %1896 = vmatpush1.bf16.msra.mxu0 0
      %1897 = vmatprep.subr.bf16.mxu0 0
      %1898 = vmatpush1.bf16.msra.mxu0 0
      %1899 = vmatprep.subr.bf16.mxu0 0
      %1900 = vmatpush1.bf16.msra.mxu0 0
      %1901 = vmatprep.subr.bf16.mxu0 0
      %1902 = vmatpush1.bf16.msra.mxu0 0
      %1903 = vmatprep.subr.bf16.mxu0 0
      %1904 = vmatpush1.bf16.msra.mxu0 0
      %1905 = vmatprep.subr.bf16.mxu0 0
      %1906 = vmatpush1.bf16.msra.mxu0 0
      %1907 = vmatprep.subr.bf16.mxu0 0
      %1908 = vmatpush1.bf16.msra.mxu0 0
      %1909 = vmatprep.subr.bf16.mxu0 0
      %1910 = vmatpush1.bf16.msra.mxu0 0
      %1911 = vmatprep.subr.bf16.mxu0 0
      %1912 = vmatpush1.bf16.msra.mxu0 0
      %1913 = vmatprep.subr.bf16.mxu0 0
      %1914 = vmatpush1.bf16.msra.mxu0 0
      %1915 = vmatprep.subr.bf16.mxu0 0
      %1916 = vmatpush1.bf16.msra.mxu0 0
      %1917 = vmatprep.subr.bf16.mxu0 0
      %1918 = vmatpush1.bf16.msra.mxu0 0
      %1919 = vmatprep.mubr.bf16.mxu0 0
      %1920 = vmatmul.mubr.bf16.gmra.mrb[0].mxu0 %v1882
      %v1921 = vpop.f32.mrb[0].mxu0
      %v1922 = vadd.f32 0.0, %v1921
      %v1923 = vpop.f32.mrb[0].mxu0
      %v1924 = vpop.f32.mrb[0].mxu0
      %v1925 = vadd.f32 0.0, %v1924
      %v1926 = vpop.f32.mrb[0].mxu0
      %1927 = vmatprep.mubr.bf16.mxu0 0
      %1928 = vmatmul.mubr.bf16.gmra.mrb[0].mxu0 %v1885
      %v1929 = vpop.f32.mrb[0].mxu0
      %v1930 = vadd.f32 0.0, %v1929
      %v1931 = vpop.f32.mrb[0].mxu0
      %v1932 = vpop.f32.mrb[0].mxu0
      %v1933 = vadd.f32 0.0, %v1932
      %v1934 = vpop.f32.mrb[0].mxu0
      %1935 = vdwg.mxu0
      %v1936 = vadd.f32 %v1697, %v1922
      %v1937 = vadd.f32 %v1698, %v1925
      %v1938 = vadd.f32 %v1699, %v1930
      %v1939 = vadd.f32 %v1700, %v1933
      %v1940 = vld [vmem:[%s601] sm:$0x1]
      %v1942 = vlaneseq
      %v1943 = vshrl.u32 %v1942, 7
      %v1944 = vsub.s32 0, %v1943
      %v1945 = vrot.slane %v1940, %v1944
      %v1947 = vadd.f32 %v1936, %v1945
      %v1948 = vadd.f32 %v1937, %v1945
      %v1949 = vadd.f32 %v1938, %v1945
      %v1950 = vadd.f32 %v1939, %v1945
      %v1951 = vadd.f32 %v644, %v1947
      %v1952 = vadd.f32 %v645, %v1948
      %v1953 = vadd.f32 %v646, %v1949
      %v1954 = vadd.f32 %v647, %v1950
      %v1955 = vld [vmem:[%s604] sm:$0x1]
      %v1956 = vld [vmem:[%s607] sm:$0x1]
      %1957 = vadd.xlane.f32.xlu0 %v1951
      %v1958 = vpop.xlane.xlu0 %1957
      %1959 = vadd.xlane.f32.xlu0 %v1952
      %v1960 = vpop.xlane.xlu0 %1959
      %1961 = vadd.xlane.f32.xlu0 %v1953
      %v1962 = vpop.xlane.xlu0 %1961
      %1963 = vadd.xlane.f32.xlu0 %v1954
      %v1964 = vpop.xlane.xlu0 %1963
      %v1965 = vrcp.pop 128.0
      %v1966 = vmul.f32 %v1958, %v1965
      %v1967 = vmul.f32 %v1960, %v1965
      %v1968 = vmul.f32 %v1962, %v1965
      %v1969 = vmul.f32 %v1964, %v1965
      %v1970 = vsub.f32 %v1951, %v1966
      %v1971 = vsub.f32 %v1952, %v1967
      %v1972 = vsub.f32 %v1953, %v1968
      %v1973 = vsub.f32 %v1954, %v1969
      %v1974 = vmul.f32 %v1970, %v1970
      %v1975 = vmul.f32 %v1971, %v1971
      %v1976 = vmul.f32 %v1972, %v1972
      %v1977 = vmul.f32 %v1973, %v1973
      %1978 = vadd.xlane.f32.xlu0 %v1974
      %v1979 = vpop.xlane.xlu0 %1978
      %1980 = vadd.xlane.f32.xlu0 %v1975
      %v1981 = vpop.xlane.xlu0 %1980
      %1982 = vadd.xlane.f32.xlu0 %v1976
      %v1983 = vpop.xlane.xlu0 %1982
      %1984 = vadd.xlane.f32.xlu0 %v1977
      %v1985 = vpop.xlane.xlu0 %1984
      %v1986 = vmul.f32 %v1979, %v1965
      %v1987 = vmul.f32 %v1981, %v1965
      %v1988 = vmul.f32 %v1983, %v1965
      %v1989 = vmul.f32 %v1985, %v1965
      %v1990 = vadd.f32 %v1986, 1e-12
      %v1991 = vadd.f32 %v1987, 1e-12
      %v1992 = vadd.f32 %v1988, 1e-12
      %v1993 = vadd.f32 %v1989, 1e-12
      %v1994 = vrsqrt.pop %v1990
      %v1995 = vrsqrt.pop %v1991
      %v1996 = vrsqrt.pop %v1992
      %v1997 = vrsqrt.pop %v1993
      %v1998 = vmul.f32 %v1970, %v1994
      %v1999 = vmul.f32 %v1971, %v1995
      %v2000 = vmul.f32 %v1972, %v1996
      %v2001 = vmul.f32 %v1973, %v1997
      %v2003 = vlaneseq
      %v2004 = vshrl.u32 %v2003, 7
      %v2005 = vsub.s32 0, %v2004
      %v2006 = vrot.slane %v1955, %v2005
      %v2008 = vmul.f32 %v1998, %v2006
      %v2009 = vmul.f32 %v1999, %v2006
      %v2010 = vmul.f32 %v2000, %v2006
      %v2011 = vmul.f32 %v2001, %v2006
      %v2013 = vlaneseq
      %v2014 = vshrl.u32 %v2013, 7
      %v2015 = vsub.s32 0, %v2014
      %v2016 = vrot.slane %v1956, %v2015
      %v2018 = vadd.f32 %v2008, %v2016
      %v2019 = vadd.f32 %v2009, %v2016
      %v2020 = vadd.f32 %v2010, %v2016
      %v2021 = vadd.f32 %v2011, %v2016
      %v2022 = vpack.c.bf16 %v2019, %v2018
      %v2023 = vpack.c.bf16 %v2021, %v2020
      %v2024 = vld [vmem:[%s612] sm:$0xff]
      %v2025 = vld [vmem:[%s612 + $0x8] sm:$0xff]
      %v2026 = vld [vmem:[%s612 + $0x10] sm:$0xff]
      %v2027 = vld [vmem:[%s612 + $0x18] sm:$0xff]
      %v2028 = vld [vmem:[%s612 + $0x20] sm:$0xff]
      %v2029 = vld [vmem:[%s612 + $0x28] sm:$0xff]
      %v2030 = vld [vmem:[%s612 + $0x30] sm:$0xff]
      %v2031 = vld [vmem:[%s612 + $0x38] sm:$0xff]
      %v2032 = vld [vmem:[%s612 + $0x40] sm:$0xff]
      %v2033 = vld [vmem:[%s612 + $0x48] sm:$0xff]
      %v2034 = vld [vmem:[%s612 + $0x50] sm:$0xff]
      %v2035 = vld [vmem:[%s612 + $0x58] sm:$0xff]
      %v2036 = vld [vmem:[%s612 + $0x60] sm:$0xff]
      %v2037 = vld [vmem:[%s612 + $0x68] sm:$0xff]
      %v2038 = vld [vmem:[%s612 + $0x70] sm:$0xff]
      %v2039 = vld [vmem:[%s612 + $0x78] sm:$0xff]
      %v2040 = vld [vmem:[%s616] sm:$0x3]
      %v2042 = vlaneseq
      %v2043 = vshrl.u32 %v2042, 7
      %v2044 = vsub.s32 0, %v2043
      %v2045 = vrot.slane %v2040, %v2044
      %v2046 = vlaneseq
      %v2047 = vshrl.u32 %v2046, 7
      %v2048 = vsub.s32 1, %v2047
      %v2049 = vrot.slane %v2040, %v2048
      %v2068 = vunpack.c.l.b16 %v2024
      %v2069 = vunpack.c.h.b16 %v2024
      %v2070 = vunpack.c.l.b16 %v2025
      %v2071 = vunpack.c.h.b16 %v2025
      %v2072 = vunpack.c.l.b16 %v2026
      %v2073 = vunpack.c.h.b16 %v2026
      %v2074 = vunpack.c.l.b16 %v2027
      %v2075 = vunpack.c.h.b16 %v2027
      %v2076 = vunpack.c.l.b16 %v2028
      %v2077 = vunpack.c.h.b16 %v2028
      %v2078 = vunpack.c.l.b16 %v2029
      %v2079 = vunpack.c.h.b16 %v2029
      %v2080 = vunpack.c.l.b16 %v2030
      %v2081 = vunpack.c.h.b16 %v2030
      %v2082 = vunpack.c.l.b16 %v2031
      %v2083 = vunpack.c.h.b16 %v2031
      %v2084 = vunpack.c.l.b16 %v2032
      %v2085 = vunpack.c.h.b16 %v2032
      %v2086 = vunpack.c.l.b16 %v2033
      %v2087 = vunpack.c.h.b16 %v2033
      %v2088 = vunpack.c.l.b16 %v2034
      %v2089 = vunpack.c.h.b16 %v2034
      %v2090 = vunpack.c.l.b16 %v2035
      %v2091 = vunpack.c.h.b16 %v2035
      %v2092 = vunpack.c.l.b16 %v2036
      %v2093 = vunpack.c.h.b16 %v2036
      %v2094 = vunpack.c.l.b16 %v2037
      %v2095 = vunpack.c.h.b16 %v2037
      %v2096 = vunpack.c.l.b16 %v2038
      %v2097 = vunpack.c.h.b16 %v2038
      %v2098 = vunpack.c.l.b16 %v2039
      %v2099 = vunpack.c.h.b16 %v2039
      %v2100 = vpack.c.b16 %v2070, %v2068
      %v2101 = vpack.c.b16 %v2071, %v2069
      %v2102 = vpack.c.b16 %v2074, %v2072
      %v2103 = vpack.c.b16 %v2075, %v2073
      %v2104 = vpack.c.b16 %v2078, %v2076
      %v2105 = vpack.c.b16 %v2079, %v2077
      %v2106 = vpack.c.b16 %v2082, %v2080
      %v2107 = vpack.c.b16 %v2083, %v2081
      %v2108 = vpack.c.b16 %v2086, %v2084
      %v2109 = vpack.c.b16 %v2087, %v2085
      %v2110 = vpack.c.b16 %v2090, %v2088
      %v2111 = vpack.c.b16 %v2091, %v2089
      %v2112 = vpack.c.b16 %v2094, %v2092
      %v2113 = vpack.c.b16 %v2095, %v2093
      %v2114 = vpack.c.b16 %v2098, %v2096
      %v2115 = vpack.c.b16 %v2099, %v2097
      %2132 = vmatprep.subr.bf16.mxu0 %v2101
      %2133 = vmatpush1.bf16.msra.mxu0 %v2100
      %2134 = vmatprep.subr.bf16.mxu0 %v2103
      %2135 = vmatpush1.bf16.msra.mxu0 %v2102
      %2136 = vmatprep.subr.bf16.mxu0 %v2105
      %2137 = vmatpush1.bf16.msra.mxu0 %v2104
      %2138 = vmatprep.subr.bf16.mxu0 %v2107
      %2139 = vmatpush1.bf16.msra.mxu0 %v2106
      %2140 = vmatprep.subr.bf16.mxu0 %v2109
      %2141 = vmatpush1.bf16.msra.mxu0 %v2108
      %2142 = vmatprep.subr.bf16.mxu0 %v2111
      %2143 = vmatpush1.bf16.msra.mxu0 %v2110
      %2144 = vmatprep.subr.bf16.mxu0 %v2113
      %2145 = vmatpush1.bf16.msra.mxu0 %v2112
      %2146 = vmatprep.subr.bf16.mxu0 %v2115
      %2147 = vmatpush1.bf16.msra.mxu0 %v2114
      %2148 = vmatprep.subr.bf16.mxu0 0
      %2149 = vmatpush1.bf16.msra.mxu0 0
      %2150 = vmatprep.subr.bf16.mxu0 0
      %2151 = vmatpush1.bf16.msra.mxu0 0
      %2152 = vmatprep.subr.bf16.mxu0 0
      %2153 = vmatpush1.bf16.msra.mxu0 0
      %2154 = vmatprep.subr.bf16.mxu0 0
      %2155 = vmatpush1.bf16.msra.mxu0 0
      %2156 = vmatprep.subr.bf16.mxu0 0
      %2157 = vmatpush1.bf16.msra.mxu0 0
      %2158 = vmatprep.subr.bf16.mxu0 0
      %2159 = vmatpush1.bf16.msra.mxu0 0
      %2160 = vmatprep.subr.bf16.mxu0 0
      %2161 = vmatpush1.bf16.msra.mxu0 0
      %2162 = vmatprep.subr.bf16.mxu0 0
      %2163 = vmatpush1.bf16.msra.mxu0 0
      %2164 = vmatprep.mubr.bf16.mxu0 0
      %2165 = vmatmul.mubr.bf16.gmra.mrb[0].mxu0 %v2022
      %v2166 = vpop.f32.mrb[0].mxu0
      %v2167 = vadd.f32 %v2045, %v2166
      %v2168 = vpop.f32.mrb[0].mxu0
      %v2169 = vadd.f32 %v2049, %v2168
      %v2170 = vpop.f32.mrb[0].mxu0
      %v2171 = vadd.f32 %v2045, %v2170
      %v2172 = vpop.f32.mrb[0].mxu0
      %v2173 = vadd.f32 %v2049, %v2172
      %2174 = vmatprep.mubr.bf16.mxu0 0
      %2175 = vmatmul.mubr.bf16.gmra.mrb[0].mxu0 %v2023
      %v2176 = vpop.f32.mrb[0].mxu0
      %v2177 = vadd.f32 %v2045, %v2176
      %v2178 = vpop.f32.mrb[0].mxu0
      %v2179 = vadd.f32 %v2049, %v2178
      %v2180 = vpop.f32.mrb[0].mxu0
      %v2181 = vadd.f32 %v2045, %v2180
      %v2182 = vpop.f32.mrb[0].mxu0
      %v2183 = vadd.f32 %v2049, %v2182
      %2184 = vdwg.mxu0
      %v2185 = vmul.f32 %v2167, %v2167
      %v2186 = vmul.f32 %v2169, %v2169
      %v2187 = vmul.f32 %v2171, %v2171
      %v2188 = vmul.f32 %v2173, %v2173
      %v2189 = vmul.f32 %v2177, %v2177
      %v2190 = vmul.f32 %v2179, %v2179
      %v2191 = vmul.f32 %v2181, %v2181
      %v2192 = vmul.f32 %v2183, %v2183
      %v2193 = vmul.f32 %v2167, %v2185
      %v2194 = vmul.f32 %v2169, %v2186
      %v2195 = vmul.f32 %v2171, %v2187
      %v2196 = vmul.f32 %v2173, %v2188
      %v2197 = vmul.f32 %v2177, %v2189
      %v2198 = vmul.f32 %v2179, %v2190
      %v2199 = vmul.f32 %v2181, %v2191
      %v2200 = vmul.f32 %v2183, %v2192
      %v2201 = vmul.f32 %v2193, 0.044715
      %v2202 = vmul.f32 %v2194, 0.044715
      %v2203 = vmul.f32 %v2195, 0.044715
      %v2204 = vmul.f32 %v2196, 0.044715
      %v2205 = vmul.f32 %v2197, 0.044715
      %v2206 = vmul.f32 %v2198, 0.044715
      %v2207 = vmul.f32 %v2199, 0.044715
      %v2208 = vmul.f32 %v2200, 0.044715
      %v2209 = vadd.f32 %v2167, %v2201
      %v2210 = vadd.f32 %v2169, %v2202
      %v2211 = vadd.f32 %v2171, %v2203
      %v2212 = vadd.f32 %v2173, %v2204
      %v2213 = vadd.f32 %v2177, %v2205
      %v2214 = vadd.f32 %v2179, %v2206
      %v2215 = vadd.f32 %v2181, %v2207
      %v2216 = vadd.f32 %v2183, %v2208
      %v2217 = vmul.f32 %v2209, 0.7978846
      %v2218 = vmul.f32 %v2210, 0.7978846
      %v2219 = vmul.f32 %v2211, 0.7978846
      %v2220 = vmul.f32 %v2212, 0.7978846
      %v2221 = vmul.f32 %v2213, 0.7978846
      %v2222 = vmul.f32 %v2214, 0.7978846
      %v2223 = vmul.f32 %v2215, 0.7978846
      %v2224 = vmul.f32 %v2216, 0.7978846
      %v2225 = vtanh.pop %v2217
      %v2226 = vtanh.pop %v2218
      %v2227 = vtanh.pop %v2219
      %v2228 = vtanh.pop %v2220
      %v2229 = vtanh.pop %v2221
      %v2230 = vtanh.pop %v2222
      %v2231 = vtanh.pop %v2223
      %v2232 = vtanh.pop %v2224
      %v2233 = vadd.f32 %v2225, 1.0
      %v2234 = vadd.f32 %v2226, 1.0
      %v2235 = vadd.f32 %v2227, 1.0
      %v2236 = vadd.f32 %v2228, 1.0
      %v2237 = vadd.f32 %v2229, 1.0
      %v2238 = vadd.f32 %v2230, 1.0
      %v2239 = vadd.f32 %v2231, 1.0
      %v2240 = vadd.f32 %v2232, 1.0
      %v2241 = vmul.f32 %v2233, 0.5
      %v2242 = vmul.f32 %v2234, 0.5
      %v2243 = vmul.f32 %v2235, 0.5
      %v2244 = vmul.f32 %v2236, 0.5
      %v2245 = vmul.f32 %v2237, 0.5
      %v2246 = vmul.f32 %v2238, 0.5
      %v2247 = vmul.f32 %v2239, 0.5
      %v2248 = vmul.f32 %v2240, 0.5
      %v2249 = vmul.f32 %v2167, %v2241
      %v2250 = vmul.f32 %v2169, %v2242
      %v2251 = vmul.f32 %v2171, %v2243
      %v2252 = vmul.f32 %v2173, %v2244
      %v2253 = vmul.f32 %v2177, %v2245
      %v2254 = vmul.f32 %v2179, %v2246
      %v2255 = vmul.f32 %v2181, %v2247
      %v2256 = vmul.f32 %v2183, %v2248
      %v2257 = vpack.c.bf16 %v2251, %v2249
      %v2258 = vpack.c.bf16 %v2252, %v2250
      %v2259 = vpack.c.bf16 %v2255, %v2253
      %v2260 = vpack.c.bf16 %v2256, %v2254
      %v2261 = vld [vmem:[%s621] sm:$0xf]
      %v2262 = vld [vmem:[%s621 + $0x4] sm:$0xf]
      %v2263 = vld [vmem:[%s621 + $0x8] sm:$0xf]
      %v2264 = vld [vmem:[%s621 + $0xc] sm:$0xf]
      %v2265 = vld [vmem:[%s621 + $0x10] sm:$0xf]
      %v2266 = vld [vmem:[%s621 + $0x14] sm:$0xf]
      %v2267 = vld [vmem:[%s621 + $0x18] sm:$0xf]
      %v2268 = vld [vmem:[%s621 + $0x1c] sm:$0xf]
      %v2269 = vld [vmem:[%s621 + $0x20] sm:$0xf]
      %v2270 = vld [vmem:[%s621 + $0x24] sm:$0xf]
      %v2271 = vld [vmem:[%s621 + $0x28] sm:$0xf]
      %v2272 = vld [vmem:[%s621 + $0x2c] sm:$0xf]
      %v2273 = vld [vmem:[%s621 + $0x30] sm:$0xf]
      %v2274 = vld [vmem:[%s621 + $0x34] sm:$0xf]
      %v2275 = vld [vmem:[%s621 + $0x38] sm:$0xf]
      %v2276 = vld [vmem:[%s621 + $0x3c] sm:$0xf]
      %v2277 = vld [vmem:[%s621 + $0x40] sm:$0xf]
      %v2278 = vld [vmem:[%s621 + $0x44] sm:$0xf]
      %v2279 = vld [vmem:[%s621 + $0x48] sm:$0xf]
      %v2280 = vld [vmem:[%s621 + $0x4c] sm:$0xf]
      %v2281 = vld [vmem:[%s621 + $0x50] sm:$0xf]
      %v2282 = vld [vmem:[%s621 + $0x54] sm:$0xf]
      %v2283 = vld [vmem:[%s621 + $0x58] sm:$0xf]
      %v2284 = vld [vmem:[%s621 + $0x5c] sm:$0xf]
      %v2285 = vld [vmem:[%s621 + $0x60] sm:$0xf]
      %v2286 = vld [vmem:[%s621 + $0x64] sm:$0xf]
      %v2287 = vld [vmem:[%s621 + $0x68] sm:$0xf]
      %v2288 = vld [vmem:[%s621 + $0x6c] sm:$0xf]
      %v2289 = vld [vmem:[%s621 + $0x70] sm:$0xf]
      %v2290 = vld [vmem:[%s621 + $0x74] sm:$0xf]
      %v2291 = vld [vmem:[%s621 + $0x78] sm:$0xf]
      %v2292 = vld [vmem:[%s621 + $0x7c] sm:$0xf]
      %v2293 = vld [vmem:[%s624] sm:$0x1]
      %v2295 = vlaneseq
      %v2296 = vshrl.u32 %v2295, 7
      %v2297 = vsub.s32 0, %v2296
      %v2298 = vrot.slane %v2293, %v2297
      %v2332 = vunpack.c.l.b16 %v2261
      %v2333 = vunpack.c.l.b16 %v2262
      %v2334 = vunpack.c.l.b16 %v2263
      %v2335 = vunpack.c.l.b16 %v2264
      %v2336 = vunpack.c.l.b16 %v2265
      %v2337 = vunpack.c.l.b16 %v2266
      %v2338 = vunpack.c.l.b16 %v2267
      %v2339 = vunpack.c.l.b16 %v2268
      %v2340 = vunpack.c.l.b16 %v2269
      %v2341 = vunpack.c.l.b16 %v2270
      %v2342 = vunpack.c.l.b16 %v2271
      %v2343 = vunpack.c.l.b16 %v2272
      %v2344 = vunpack.c.l.b16 %v2273
      %v2345 = vunpack.c.l.b16 %v2274
      %v2346 = vunpack.c.l.b16 %v2275
      %v2347 = vunpack.c.l.b16 %v2276
      %v2348 = vunpack.c.l.b16 %v2277
      %v2349 = vunpack.c.l.b16 %v2278
      %v2350 = vunpack.c.l.b16 %v2279
      %v2351 = vunpack.c.l.b16 %v2280
      %v2352 = vunpack.c.l.b16 %v2281
      %v2353 = vunpack.c.l.b16 %v2282
      %v2354 = vunpack.c.l.b16 %v2283
      %v2355 = vunpack.c.l.b16 %v2284
      %v2356 = vunpack.c.l.b16 %v2285
      %v2357 = vunpack.c.l.b16 %v2286
      %v2358 = vunpack.c.l.b16 %v2287
      %v2359 = vunpack.c.l.b16 %v2288
      %v2360 = vunpack.c.l.b16 %v2289
      %v2361 = vunpack.c.l.b16 %v2290
      %v2362 = vunpack.c.l.b16 %v2291
      %v2363 = vunpack.c.l.b16 %v2292
      %v2364 = vpack.c.b16 %v2333, %v2332
      %v2365 = vpack.c.b16 %v2335, %v2334
      %v2366 = vpack.c.b16 %v2337, %v2336
      %v2367 = vpack.c.b16 %v2339, %v2338
      %v2368 = vpack.c.b16 %v2341, %v2340
      %v2369 = vpack.c.b16 %v2343, %v2342
      %v2370 = vpack.c.b16 %v2345, %v2344
      %v2371 = vpack.c.b16 %v2347, %v2346
      %v2372 = vpack.c.b16 %v2349, %v2348
      %v2373 = vpack.c.b16 %v2351, %v2350
      %v2374 = vpack.c.b16 %v2353, %v2352
      %v2375 = vpack.c.b16 %v2355, %v2354
      %v2376 = vpack.c.b16 %v2357, %v2356
      %v2377 = vpack.c.b16 %v2359, %v2358
      %v2378 = vpack.c.b16 %v2361, %v2360
      %v2379 = vpack.c.b16 %v2363, %v2362
      %2396 = vmatprep.subr.bf16.mxu0 0
      %2397 = vmatpush1.bf16.msra.mxu0 %v2364
      %2398 = vmatprep.subr.bf16.mxu0 0
      %2399 = vmatpush1.bf16.msra.mxu0 %v2365
      %2400 = vmatprep.subr.bf16.mxu0 0
      %2401 = vmatpush1.bf16.msra.mxu0 %v2366
      %2402 = vmatprep.subr.bf16.mxu0 0
      %2403 = vmatpush1.bf16.msra.mxu0 %v2367
      %2404 = vmatprep.subr.bf16.mxu0 0
      %2405 = vmatpush1.bf16.msra.mxu0 %v2368
      %2406 = vmatprep.subr.bf16.mxu0 0
      %2407 = vmatpush1.bf16.msra.mxu0 %v2369
      %2408 = vmatprep.subr.bf16.mxu0 0
      %2409 = vmatpush1.bf16.msra.mxu0 %v2370
      %2410 = vmatprep.subr.bf16.mxu0 0
      %2411 = vmatpush1.bf16.msra.mxu0 %v2371
      %2412 = vmatprep.subr.bf16.mxu0 0
      %2413 = vmatpush1.bf16.msra.mxu0 %v2372
      %2414 = vmatprep.subr.bf16.mxu0 0
      %2415 = vmatpush1.bf16.msra.mxu0 %v2373
      %2416 = vmatprep.subr.bf16.mxu0 0
      %2417 = vmatpush1.bf16.msra.mxu0 %v2374
      %2418 = vmatprep.subr.bf16.mxu0 0
      %2419 = vmatpush1.bf16.msra.mxu0 %v2375
      %2420 = vmatprep.subr.bf16.mxu0 0
      %2421 = vmatpush1.bf16.msra.mxu0 %v2376
      %2422 = vmatprep.subr.bf16.mxu0 0
      %2423 = vmatpush1.bf16.msra.mxu0 %v2377
      %2424 = vmatprep.subr.bf16.mxu0 0
      %2425 = vmatpush1.bf16.msra.mxu0 %v2378
      %2426 = vmatprep.subr.bf16.mxu0 0
      %2427 = vmatpush1.bf16.msra.mxu0 %v2379
      %2428 = vmatprep.mubr.bf16.mxu0 %v2258
      %2429 = vmatmul.mubr.bf16.gmra.mrb[0].mxu0 %v2257
      %v2430 = vpop.f32.mrb[0].mxu0
      %v2431 = vadd.f32 %v2298, %v2430
      %v2432 = vpop.f32.mrb[0].mxu0
      %v2433 = vpop.f32.mrb[0].mxu0
      %v2434 = vadd.f32 %v2298, %v2433
      %v2435 = vpop.f32.mrb[0].mxu0
      %2436 = vmatprep.mubr.bf16.mxu0 %v2260
      %2437 = vmatmul.mubr.bf16.gmra.mrb[0].mxu0 %v2259
      %v2438 = vpop.f32.mrb[0].mxu0
      %v2439 = vadd.f32 %v2298, %v2438
      %v2440 = vpop.f32.mrb[0].mxu0
      %v2441 = vpop.f32.mrb[0].mxu0
      %v2442 = vadd.f32 %v2298, %v2441
      %v2443 = vpop.f32.mrb[0].mxu0
      %2444 = vdwg.mxu0
      %v2445 = vadd.f32 %v2018, %v2431
      %v2446 = vadd.f32 %v2019, %v2434
      %v2447 = vadd.f32 %v2020, %v2439
      %v2448 = vadd.f32 %v2021, %v2442
      %v2449 = vld [vmem:[%s627] sm:$0x1]
      %v2450 = vld [vmem:[%s630] sm:$0x1]
      %2451 = vadd.xlane.f32.xlu0 %v2445
      %v2452 = vpop.xlane.xlu0 %2451
      %2453 = vadd.xlane.f32.xlu0 %v2446
      %v2454 = vpop.xlane.xlu0 %2453
      %2455 = vadd.xlane.f32.xlu0 %v2447
      %v2456 = vpop.xlane.xlu0 %2455
      %2457 = vadd.xlane.f32.xlu0 %v2448
      %v2458 = vpop.xlane.xlu0 %2457
      %v2459 = vmul.f32 %v2452, %v1965
      %v2460 = vmul.f32 %v2454, %v1965
      %v2461 = vmul.f32 %v2456, %v1965
      %v2462 = vmul.f32 %v2458, %v1965
      %v2463 = vsub.f32 %v2445, %v2459
      %v2464 = vsub.f32 %v2446, %v2460
      %v2465 = vsub.f32 %v2447, %v2461
      %v2466 = vsub.f32 %v2448, %v2462
      %v2467 = vmul.f32 %v2463, %v2463
      %v2468 = vmul.f32 %v2464, %v2464
      %v2469 = vmul.f32 %v2465, %v2465
      %v2470 = vmul.f32 %v2466, %v2466
      %2471 = vadd.xlane.f32.xlu0 %v2467
      %v2472 = vpop.xlane.xlu0 %2471
      %2473 = vadd.xlane.f32.xlu0 %v2468
      %v2474 = vpop.xlane.xlu0 %2473
      %2475 = vadd.xlane.f32.xlu0 %v2469
      %v2476 = vpop.xlane.xlu0 %2475
      %2477 = vadd.xlane.f32.xlu0 %v2470
      %v2478 = vpop.xlane.xlu0 %2477
      %v2479 = vmul.f32 %v2472, %v1965
      %v2480 = vmul.f32 %v2474, %v1965
      %v2481 = vmul.f32 %v2476, %v1965
      %v2482 = vmul.f32 %v2478, %v1965
      %v2483 = vadd.f32 %v2479, 1e-12
      %v2484 = vadd.f32 %v2480, 1e-12
      %v2485 = vadd.f32 %v2481, 1e-12
      %v2486 = vadd.f32 %v2482, 1e-12
      %v2487 = vrsqrt.pop %v2483
      %v2488 = vrsqrt.pop %v2484
      %v2489 = vrsqrt.pop %v2485
      %v2490 = vrsqrt.pop %v2486
      %v2491 = vmul.f32 %v2463, %v2487
      %v2492 = vmul.f32 %v2464, %v2488
      %v2493 = vmul.f32 %v2465, %v2489
      %v2494 = vmul.f32 %v2466, %v2490
      %v2496 = vlaneseq
      %v2497 = vshrl.u32 %v2496, 7
      %v2498 = vsub.s32 0, %v2497
      %v2499 = vrot.slane %v2449, %v2498
      %v2501 = vmul.f32 %v2491, %v2499
      %v2502 = vmul.f32 %v2492, %v2499
      %v2503 = vmul.f32 %v2493, %v2499
      %v2504 = vmul.f32 %v2494, %v2499
      %v2506 = vlaneseq
      %v2507 = vshrl.u32 %v2506, 7
      %v2508 = vsub.s32 0, %v2507
      %v2509 = vrot.slane %v2450, %v2508
      %v2511 = vadd.f32 %v2501, %v2509
      %v2512 = vadd.f32 %v2502, %v2509
      %v2513 = vadd.f32 %v2503, %v2509
      %v2514 = vadd.f32 %v2504, %v2509
      %2515 = vst [vmem:[%s14] sm:$0xff] %v2511
      %2516 = vst [vmem:[%s14 + $0x8] sm:$0xff] %v2512
      %2517 = vst [vmem:[%s14 + $0x10] sm:$0xff] %v2513
      %2518 = vst [vmem:[%s14 + $0x18] sm:$0xff] %v2514
      // Predicated region
      $region81: #{encoding_model_forward.1} parent=75 // pred_check
        %p2519 = pneg %p392
      $region82: #{encoding_model_forward.1} parent=75 // pred_check_branch
        %2521 = sbr.rel (%p2519) target = $region84
      $region83: #{encoding_model_forward.1} parent=75 // pred_region
        _
      $region84: #{encoding_model_forward.1} parent=75 // pred_fallthru
        _
      // Predicated region
      $region85: #{encoding_model_forward.1} parent=75 // pred_check
        %p2522 = pneg %p392
      $region86: #{encoding_model_forward.1} parent=75 // pred_check_branch
        %2524 = sbr.rel (%p2522) target = $region88
      $region87: #{encoding_model_forward.1} parent=75 // pred_region
        _
      $region88: #{encoding_model_forward.1} parent=75 // pred_fallthru
        _
    $region76: #{encoding_model_forward.1} parent=5 // pred_fallthru
      _
    %p2525 = scmp.le.s32.totalorder 2, %s20
    // Predicated region
    $region89: #{encoding_model_forward.1} parent=5 // pred_check
      %p2526 = pneg %p2525
    $region90: #{encoding_model_forward.1} parent=5 // pred_check_branch
      %2528 = sbr.rel (%p2526) target = $region92
    $region91: #{encoding_model_forward.1} parent=5 // pred_region
      %s2529 = ssub.s32 %s20, 2
    $region92: #{encoding_model_forward.1} parent=5 // pred_fallthru
      _
  $region6: #{encoding_model_forward.1} parent=0 // loop_footer
    %s24 = sadd.s32 1, %s20
  $region7: #{encoding_model_forward.1} parent=0 // loop_footer_branch
    %19 = sbr.rel target = $region3
  $region8: #{encoding_model_forward.1} parent=0 // loop_exit
    _

</llo_original>
